<compile_context>
chip_gen: v5e
topology: v5e:2x2
jax: 0.10.0
libtpu: 0.0.40
codegen_flags: <defaults>
</compile_context>

<pallas_src>
import functools

import jax
import jax.numpy as jnp
from jax.experimental import pallas as pl
from jax.experimental.pallas import tpu as pltpu


def _round_up(x, m):
    return (x + m - 1) // m * m


def _apply_act(x, act):
    if act == "relu":
        return jnp.maximum(x, 0.0)
    if act == "leaky":  # LeakyReLU(0.1) as in ConvBlock
        return jnp.where(x >= 0, x, 0.1 * x)
    return x


def _tpu_config():
    """Generation-dependent tiling / VMEM parameters."""
    try:
        kind = jax.devices()[0].device_kind.lower()
    except Exception:  # pragma: no cover
        kind = ""
    is_v5 = "v5" in kind
    is_v7 = "v7" in kind
    mxu_n = 128 if is_v5 else 256            # v6e / v7x have 256-wide MXUs
    vmem_limit = (32 if is_v7 else 64) * 1024 * 1024   # v7x: 64 MiB physical
    num_cores = 2 if is_v7 else 1            # v7x: 2 TensorCores per chip
    return mxu_n, vmem_limit, num_cores


def _pick_m_tile(M):
    """Pick tm (multiple of 8) minimizing tail padding; prefer bigger tiles."""
    best_tm, best_pad = 128, None
    for tm in (512, 256, 128, 64, 32, 16, 8):
        pad = _round_up(M, tm) - M
        if best_pad is None or pad < best_pad:
            best_pad, best_tm = pad, tm
    return best_tm


def _pick_k_tile(K, max_tk=2048):
    """Use the full 128-aligned K as one tile when it fits; else a divisor."""
    Kp = _round_up(K, 128)
    if Kp <= max_tk:
        return Kp, Kp
    for cand in range(max_tk, 127, -128):
        if Kp % cand == 0:
            return cand, Kp
    return 128, Kp


# ---------------------------------------------------------------------------
# Pallas kernel 1: tiled bf16 matmul (fp32 accum), optional fused bias + act
# ---------------------------------------------------------------------------
def _matmul_bias_act_kernel(a_ref, b_ref, bias_ref, o_ref, acc_ref, *, act):
    k = pl.program_id(2)

    @pl.when(k == 0)
    def _():
        acc_ref[...] = jnp.zeros_like(acc_ref)

    acc_ref[...] += jnp.dot(a_ref[...], b_ref[...],
                            preferred_element_type=jnp.float32)

    @pl.when(k == pl.num_programs(2) - 1)
    def _():
        out = acc_ref[...] + bias_ref[...]
        o_ref[...] = _apply_act(out, act).astype(o_ref.dtype)


def _matmul_act_kernel(a_ref, b_ref, o_ref, acc_ref, *, act):
    k = pl.program_id(2)

    @pl.when(k == 0)
    def _():
        acc_ref[...] = jnp.zeros_like(acc_ref)

    acc_ref[...] += jnp.dot(a_ref[...], b_ref[...],
                            preferred_element_type=jnp.float32)

    @pl.when(k == pl.num_programs(2) - 1)
    def _():
        o_ref[...] = _apply_act(acc_ref[...], act).astype(o_ref.dtype)


def matmul_bias_act(a, b, bias=None, act=None, out_dtype=jnp.float32, *,
                    mxu_n=128, vmem_limit=64 * 1024 * 1024, num_cores=1):
    """(M,K) @ (K,N) [+ bias[N]] with optional fused activation.

    bf16 MXU operands, fp32 accumulation.  Returns the PADDED output (Mp, Np)
    together with the row tile tm (the caller slices / re-tiles as needed).
    Padded rows/columns of the output are exactly zero when bias is None and
    act is None (used by the BatchNorm path).
    """
    M, K = a.shape
    _, N = b.shape

    a = a.astype(jnp.bfloat16)
    b = b.astype(jnp.bfloat16)

    tm = _pick_m_tile(M)
    tk, Kp = _pick_k_tile(K)
    tn = 256 if (mxu_n >= 256 and N > 128) else 128   # lane-dense outputs
    Mp = _round_up(M, tm)
    Np = _round_up(N, tn)

    # Ensure the two v7x TensorCores both get work for small layers.
    if num_cores > 1 and (Mp // tm) == 1 and (Np // tn) == 1 and tm >= 16:
        tm //= 2

    if (Mp, Kp) != (M, K):
        a = jnp.pad(a, ((0, Mp - M), (0, Kp - K)))
    if (Kp, Np) != (K, N):
        b = jnp.pad(b, ((0, Kp - K), (0, Np - N)))

    grid = (Mp // tm, Np // tn, Kp // tk)
    in_specs = [
        pl.BlockSpec((tm, tk), lambda i, j, k: (i, k)),
        pl.BlockSpec((tk, tn), lambda i, j, k: (k, j)),
    ]
    operands = [a, b]
    if bias is not None:
        bias2d = jnp.pad(bias.astype(jnp.float32), (0, Np - N)).reshape(1, Np)
        in_specs.append(pl.BlockSpec((1, tn), lambda i, j, k: (0, j)))
        operands.append(bias2d)
        kernel = functools.partial(_matmul_bias_act_kernel, act=act)
    else:
        kernel = functools.partial(_matmul_act_kernel, act=act)

    out = pl.pallas_call(
        kernel,
        out_shape=jax.ShapeDtypeStruct((Mp, Np), out_dtype),
        grid_spec=pltpu.PrefetchScalarGridSpec(
            num_scalar_prefetch=0,
            grid=grid,
            in_specs=in_specs,
            out_specs=pl.BlockSpec((tm, tn), lambda i, j, k: (i, j)),
            scratch_shapes=[pltpu.VMEM((tm, tn), jnp.float32)],
        ),
        compiler_params=pltpu.CompilerParams(
            dimension_semantics=("parallel", "parallel", "arbitrary"),
            vmem_limit_bytes=vmem_limit),
    )(*operands)
    return out, tm


# ---------------------------------------------------------------------------
# Pallas kernels 2+3: row-tiled BatchNorm2d (training-mode batch statistics,
# gamma=1, beta=0) fused with the activation.
# ---------------------------------------------------------------------------
def _bn_stats_kernel(x_ref, mean_ref, inv_ref, sum_ref, sq_ref, *, n_rows, eps):
    r = pl.program_id(1)

    @pl.when(r == 0)
    def _():
        sum_ref[...] = jnp.zeros_like(sum_ref)
        sq_ref[...] = jnp.zeros_like(sq_ref)

    x = x_ref[...].astype(jnp.float32)
    sum_ref[...] += jnp.sum(x, axis=0, keepdims=True)
    sq_ref[...] += jnp.sum(x * x, axis=0, keepdims=True)

    @pl.when(r == pl.num_programs(1) - 1)
    def _():
        inv_n = 1.0 / n_rows
        mean = sum_ref[...] * inv_n
        var = jnp.maximum(sq_ref[...] * inv_n - mean * mean, 0.0)
        mean_ref[...] = mean
        inv_ref[...] = jax.lax.rsqrt(var + eps)


def _bn_norm_kernel(x_ref, mean_ref, inv_ref, o_ref, *, act):
    x = x_ref[...].astype(jnp.float32)
    y = (x - mean_ref[...]) * inv_ref[...]
    o_ref[...] = _apply_act(y, act).astype(o_ref.dtype)


def batchnorm_act(x2d, n_rows, act=None, out_dtype=jnp.float32, *,
                  row_tile, vmem_limit):
    """x2d: (Mp, Np) padded conv output (padded rows are exactly zero).
    Per-channel batch stats over the first `n_rows` rows; VMEM use is O(tile)."""
    Mp, Np = x2d.shape
    tr = row_tile                                  # divides Mp by construction
    tc = 256 if Np % 256 == 0 else 128

    mean, inv = pl.pallas_call(
        functools.partial(_bn_stats_kernel, n_rows=float(n_rows), eps=1e-5),
        out_shape=(jax.ShapeDtypeStruct((1, Np), jnp.float32),
                   jax.ShapeDtypeStruct((1, Np), jnp.float32)),
        grid_spec=pltpu.PrefetchScalarGridSpec(
            num_scalar_prefetch=0,
            grid=(Np // tc, Mp // tr),             # channel axis parallel, rows reduce
            in_specs=[pl.BlockSpec((tr, tc), lambda c, r: (r, c))],
            out_specs=[pl.BlockSpec((1, tc), lambda c, r: (0, c)),
                       pl.BlockSpec((1, tc), lambda c, r: (0, c))],
            scratch_shapes=[pltpu.VMEM((1, tc), jnp.float32),
                            pltpu.VMEM((1, tc), jnp.float32)],
        ),
        compiler_params=pltpu.CompilerParams(
            dimension_semantics=("parallel", "arbitrary"),
            vmem_limit_bytes=vmem_limit),
    )(x2d)

    out = pl.pallas_call(
        functools.partial(_bn_norm_kernel, act=act),
        out_shape=jax.ShapeDtypeStruct((Mp, Np), out_dtype),
        grid_spec=pltpu.PrefetchScalarGridSpec(
            num_scalar_prefetch=0,
            grid=(Mp // tr, Np // tc),
            in_specs=[pl.BlockSpec((tr, tc), lambda r, c: (r, c)),
                      pl.BlockSpec((1, tc), lambda r, c: (0, c)),
                      pl.BlockSpec((1, tc), lambda r, c: (0, c))],
            out_specs=pl.BlockSpec((tr, tc), lambda r, c: (r, c)),
        ),
        compiler_params=pltpu.CompilerParams(
            dimension_semantics=("parallel", "parallel"),
            vmem_limit_bytes=vmem_limit),
    )(x2d, mean, inv)
    return out


# ---------------------------------------------------------------------------
# Glue: im2col patch extraction (plain JAX strided-window gather, bf16)
# ---------------------------------------------------------------------------
def im2col(x_nhwc, kh, kw, stride, padding):
    B, H, W, C = x_nhwc.shape
    xp = jnp.pad(x_nhwc, ((0, 0), (padding, padding), (padding, padding), (0, 0)))
    OH = (H + 2 * padding - kh) // stride + 1
    OW = (W + 2 * padding - kw) // stride + 1
    patches = []
    for i in range(kh):
        for j in range(kw):
            patches.append(
                xp[:, i:i + stride * OH:stride, j:j + stride * OW:stride, :])
    p = jnp.stack(patches, axis=3)            # (B, OH, OW, kh*kw, C)
    return p.reshape(B * OH * OW, kh * kw * C), OH, OW


# ---------------------------------------------------------------------------
# ConvBlock forward: conv -> (BatchNorm2d) -> (ReLU | LeakyReLU(0.1))
# ---------------------------------------------------------------------------
def conv_block(x_nhwc, w_hwio, b, stride, padding,
               batch_norm=False, activation="ReLU", out_dtype=jnp.float32):
    """x_nhwc: (B,H,W,Cin); w_hwio: (kh,kw,Cin,Cout); b: (Cout,)."""
    B, H, W, Cin = x_nhwc.shape
    kh, kw, _, Cout = w_hwio.shape
    act = {"ReLU": "relu", "LeakyReLU": "leaky"}.get(activation, None)
    mxu_n, vmem_limit, num_cores = _tpu_config()

    patches, OH, OW = im2col(x_nhwc.astype(jnp.bfloat16), kh, kw, stride, padding)
    wm = w_hwio.reshape(kh * kw * Cin, Cout)
    M = B * OH * OW

    if batch_norm:
        # Conv bias is cancelled exactly by BN mean subtraction -> drop it.
        # bf16 intermediate halves HBM traffic; padded rows/cols stay zero so
        # the batch statistics (computed over the true M rows) are exact.
        conv_p, tm = matmul_bias_act(
            patches, wm, bias=None, act=None, out_dtype=jnp.bfloat16,
            mxu_n=mxu_n, vmem_limit=vmem_limit, num_cores=num_cores)
        out_p = batchnorm_act(conv_p, n_rows=M, act=act, out_dtype=out_dtype,
                              row_tile=tm, vmem_limit=vmem_limit)
    else:
        out_p, _ = matmul_bias_act(
            patches, wm, bias=b, act=act, out_dtype=out_dtype,
            mxu_n=mxu_n, vmem_limit=vmem_limit, num_cores=num_cores)

    out = out_p[:M, :Cout]
    return out.reshape(B, OH, OW, Cout)


def conv_block_nchw(x_nchw, w_oihw, b, stride, padding,
                    batch_norm=False, activation="ReLU", out_dtype=jnp.float32):
    """PyTorch-facing wrapper: NCHW in / NCHW out, OIHW weight."""
    x = jnp.transpose(x_nchw, (0, 2, 3, 1))
    w = jnp.transpose(w_oihw, (2, 3, 1, 0))
    out = conv_block(x, w, b, stride, padding,
                     batch_norm=batch_norm, activation=activation,
                     out_dtype=out_dtype)
    return jnp.transpose(out, (0, 3, 1, 2))


if __name__ == "__main__":
    key = jax.random.PRNGKey(0)
    kx, kw1, kb1, kw2, kb2 = jax.random.split(key, 5)

    B, Cin, H, W = 2, 4, 16, 16
    x = jax.random.normal(kx, (B, Cin, H, W), jnp.float32)

    # ConvBlock(4, 64, kernel_size=5, stride=2, padding=2,
    #           batch_norm=True, activation='LeakyReLU')
    C1 = 64
    w1 = jax.random.normal(kw1, (C1, Cin, 5, 5), jnp.float32) * 0.05
    b1 = jax.random.normal(kb1, (C1,), jnp.float32) * 0.05
    # ConvBlock(64, 128, kernel_size=3, stride=1, padding=1,
    #           batch_norm=False, activation='ReLU')
    C2 = 128
    w2 = jax.random.normal(kw2, (C2, C1, 3, 3), jnp.float32) * 0.05
    b2 = jax.random.normal(kb2, (C2,), jnp.float32) * 0.05

    # Keep NHWC (and bf16) across chained blocks; transpose only at boundaries.
    x_nhwc = jnp.transpose(x, (0, 2, 3, 1))
    w1_hwio = jnp.transpose(w1, (2, 3, 1, 0))
    w2_hwio = jnp.transpose(w2, (2, 3, 1, 0))

    def forward(xh):
        h = conv_block(xh, w1_hwio, b1, stride=2, padding=2,
                       batch_norm=True, activation="LeakyReLU",
                       out_dtype=jnp.bfloat16)        # bf16 inter-block tensor
        y = conv_block(h, w2_hwio, b2, stride=1, padding=1,
                       batch_norm=False, activation="ReLU",
                       out_dtype=jnp.float32)
        return h, jnp.transpose(y, (0, 3, 1, 2))       # back to NCHW at the end

    out1, out2 = jax.jit(forward)(x_nhwc)
    out1 = jax.block_until_ready(out1)
    out2 = jax.block_until_ready(out2)

    assert out1.shape == (B, 8, 8, C1), out1.shape
    assert out2.shape == (B, C2, 8, 8), out2.shape
    assert bool(jnp.all(jnp.isfinite(out2)))
    print("KERNEL_OK")
</pallas_src>

<mosaic_0001>
module attributes {stable_mosaic.version = 11 : i64} {
  func.func @_matmul_act_kernel(%arg0: i32, %arg1: i32, %arg2: i32, %arg3: memref<128x128xbf16, #tpu.memory_space<vmem>>, %arg4: memref<128x128xbf16, #tpu.memory_space<vmem>>, %arg5: memref<128x128xbf16, #tpu.memory_space<vmem>>, %arg6: memref<128x128xf32, #tpu.memory_space<vmem>>) attributes {dimension_semantics = [#tpu.dimension_semantics<parallel>, #tpu.dimension_semantics<parallel>, #tpu.dimension_semantics<arbitrary>], iteration_bounds = array<i64: 1, 1, 1>, scalar_prefetch = 0 : i64, scratch_operands = 1 : i64, tpu.core_type = #tpu.core_type<tc>, window_params = [{transform_indices = @transform_0, window_bounds = array<i64: 128, 128>}, {transform_indices = @transform_1, window_bounds = array<i64: 128, 128>}, {transform_indices = @transform_2, window_bounds = array<i64: 128, 128>}]} {
    %c0_i32 = arith.constant 0 : i32
    %0 = arith.cmpi eq, %arg2, %c0_i32 : i32
    %1 = arith.extui %0 : i1 to i32
    %c0_i32_0 = arith.constant 0 : i32
    %2 = arith.cmpi ne, %1, %c0_i32_0 : i32
    scf.if %2 {
      %cst_10 = arith.constant 0.000000e+00 : f32
      %12 = vector.broadcast %cst_10 : f32 to vector<128x128xf32>
      %c0_11 = arith.constant 0 : index
      %c0_12 = arith.constant 0 : index
      %13 = vector.load %arg6[%c0_11, %c0_12] : memref<128x128xf32, #tpu.memory_space<vmem>>, vector<128x128xf32>
      tpu.vector_store %arg6[%c0_11, %c0_12], %12 {strides = array<i32>} : memref<128x128xf32, #tpu.memory_space<vmem>>, vector<128x128xf32>,
    } else {
    }
    %c0 = arith.constant 0 : index
    %c0_1 = arith.constant 0 : index
    %3 = vector.load %arg6[%c0, %c0_1] : memref<128x128xf32, #tpu.memory_space<vmem>>, vector<128x128xf32>
    %c0_2 = arith.constant 0 : index
    %c0_3 = arith.constant 0 : index
    %4 = vector.load %arg3[%c0_2, %c0_3] : memref<128x128xbf16, #tpu.memory_space<vmem>>, vector<128x128xbf16>
    %c0_4 = arith.constant 0 : index
    %c0_5 = arith.constant 0 : index
    %5 = vector.load %arg4[%c0_4, %c0_5] : memref<128x128xbf16, #tpu.memory_space<vmem>>, vector<128x128xbf16>
    %cst = arith.constant dense<0.000000e+00> : vector<128x128xf32>
    %6 = tpu.matmul %4, %5, %cst {dimension_numbers = #tpu.dot_dimension_numbers<[1], [0], [0], [1], [0, 0, 1, 1], [], []>} : vector<128x128xbf16>, vector<128x128xbf16>, vector<128x128xf32> -> vector<128x128xf32>
    %7 = arith.addf %3, %6 : vector<128x128xf32>
    %c0_6 = arith.constant 0 : index
    %c0_7 = arith.constant 0 : index
    %8 = vector.load %arg6[%c0_6, %c0_7] : memref<128x128xf32, #tpu.memory_space<vmem>>, vector<128x128xf32>
    tpu.vector_store %arg6[%c0_6, %c0_7], %7 {strides = array<i32>} : memref<128x128xf32, #tpu.memory_space<vmem>>, vector<128x128xf32>,
    %c0_i32_8 = arith.constant 0 : i32
    %9 = arith.cmpi eq, %arg2, %c0_i32_8 : i32
    %10 = arith.extui %9 : i1 to i32
    %c0_i32_9 = arith.constant 0 : i32
    %11 = arith.cmpi ne, %10, %c0_i32_9 : i32
    scf.if %11 {
      %c0_10 = arith.constant 0 : index
      %c0_11 = arith.constant 0 : index
      %12 = vector.load %arg6[%c0_10, %c0_11] : memref<128x128xf32, #tpu.memory_space<vmem>>, vector<128x128xf32>
      %13 = arith.truncf %12 : vector<128x128xf32> to vector<128x128xbf16>
      %c0_12 = arith.constant 0 : index
      %c0_13 = arith.constant 0 : index
      %14 = vector.load %arg5[%c0_12, %c0_13] : memref<128x128xbf16, #tpu.memory_space<vmem>>, vector<128x128xbf16>
      tpu.vector_store %arg5[%c0_12, %c0_13], %13 {strides = array<i32>} : memref<128x128xbf16, #tpu.memory_space<vmem>>, vector<128x128xbf16>,
    } else {
    }
    return
  }
  func.func @transform_0(%arg0: i32, %arg1: i32, %arg2: i32) -> (i32, i32) {
    %c0_i32 = arith.constant 0 : i32
    return %arg0, %arg2 : i32, i32
  }
  func.func @transform_1(%arg0: i32, %arg1: i32, %arg2: i32) -> (i32, i32) {
    %c0_i32 = arith.constant 0 : i32
    return %arg2, %arg1 : i32, i32
  }
  func.func @transform_2(%arg0: i32, %arg1: i32, %arg2: i32) -> (i32, i32) {
    %c0_i32 = arith.constant 0 : i32
    return %arg0, %arg1 : i32, i32
  }
}

module attributes {stable_mosaic.version = 11 : i64} {
  func.func @_bn_stats_kernel(%arg0: i32, %arg1: i32, %arg2: memref<128x128xbf16, #tpu.memory_space<vmem>>, %arg3: memref<1x128xf32, #tpu.memory_space<vmem>>, %arg4: memref<1x128xf32, #tpu.memory_space<vmem>>, %arg5: memref<1x128xf32, #tpu.memory_space<vmem>>, %arg6: memref<1x128xf32, #tpu.memory_space<vmem>>) attributes {dimension_semantics = [#tpu.dimension_semantics<parallel>, #tpu.dimension_semantics<arbitrary>], iteration_bounds = array<i64: 1, 1>, scalar_prefetch = 0 : i64, scratch_operands = 2 : i64, tpu.core_type = #tpu.core_type<tc>, window_params = [{transform_indices = @transform_0, window_bounds = array<i64: 128, 128>}, {transform_indices = @transform_1, window_bounds = array<i64: 1, 128>}, {transform_indices = @transform_2, window_bounds = array<i64: 1, 128>}]} {
    %c0_i32 = arith.constant 0 : i32
    %0 = arith.cmpi eq, %arg1, %c0_i32 : i32
    %1 = arith.extui %0 : i1 to i32
    %c0_i32_0 = arith.constant 0 : i32
    %2 = arith.cmpi ne, %1, %c0_i32_0 : i32
    scf.if %2 {
      %cst_13 = arith.constant 0.000000e+00 : f32
      %19 = vector.broadcast %cst_13 : f32 to vector<1x128xf32>
      %c0_14 = arith.constant 0 : index
      %c0_15 = arith.constant 0 : index
      %20 = vector.load %arg5[%c0_14, %c0_15] : memref<1x128xf32, #tpu.memory_space<vmem>>, vector<1x128xf32>
      tpu.vector_store %arg5[%c0_14, %c0_15], %19 {strides = array<i32>} : memref<1x128xf32, #tpu.memory_space<vmem>>, vector<1x128xf32>,
      %cst_16 = arith.constant 0.000000e+00 : f32
      %21 = vector.broadcast %cst_16 : f32 to vector<1x128xf32>
      %c0_17 = arith.constant 0 : index
      %c0_18 = arith.constant 0 : index
      %22 = vector.load %arg6[%c0_17, %c0_18] : memref<1x128xf32, #tpu.memory_space<vmem>>, vector<1x128xf32>
      tpu.vector_store %arg6[%c0_17, %c0_18], %21 {strides = array<i32>} : memref<1x128xf32, #tpu.memory_space<vmem>>, vector<1x128xf32>,
    } else {
    }
    %c0 = arith.constant 0 : index
    %c0_1 = arith.constant 0 : index
    %3 = vector.load %arg2[%c0, %c0_1] : memref<128x128xbf16, #tpu.memory_space<vmem>>, vector<128x128xbf16>
    %4 = arith.extf %3 : vector<128x128xbf16> to vector<128x128xf32>
    %c0_2 = arith.constant 0 : index
    %c0_3 = arith.constant 0 : index
    %5 = vector.load %arg5[%c0_2, %c0_3] : memref<1x128xf32, #tpu.memory_space<vmem>>, vector<1x128xf32>
    %cst = arith.constant dense<0.000000e+00> : vector<128xf32>
    %6 = vector.multi_reduction <add>, %4, %cst [0] : vector<128x128xf32> to vector<128xf32>
    %7 = vector.shape_cast %6 : vector<128xf32> to vector<1x128xf32>
    %8 = arith.addf %5, %7 : vector<1x128xf32>
    %c0_4 = arith.constant 0 : index
    %c0_5 = arith.constant 0 : index
    %9 = vector.load %arg5[%c0_4, %c0_5] : memref<1x128xf32, #tpu.memory_space<vmem>>, vector<1x128xf32>
    tpu.vector_store %arg5[%c0_4, %c0_5], %8 {strides = array<i32>} : memref<1x128xf32, #tpu.memory_space<vmem>>, vector<1x128xf32>,
    %c0_6 = arith.constant 0 : index
    %c0_7 = arith.constant 0 : index
    %10 = vector.load %arg6[%c0_6, %c0_7] : memref<1x128xf32, #tpu.memory_space<vmem>>, vector<1x128xf32>
    %11 = arith.mulf %4, %4 : vector<128x128xf32>
    %cst_8 = arith.constant dense<0.000000e+00> : vector<128xf32>
    %12 = vector.multi_reduction <add>, %11, %cst_8 [0] : vector<128x128xf32> to vector<128xf32>
    %13 = vector.shape_cast %12 : vector<128xf32> to vector<1x128xf32>
    %14 = arith.addf %10, %13 : vector<1x128xf32>
    %c0_9 = arith.constant 0 : index
    %c0_10 = arith.constant 0 : index
    %15 = vector.load %arg6[%c0_9, %c0_10] : memref<1x128xf32, #tpu.memory_space<vmem>>, vector<1x128xf32>
    tpu.vector_store %arg6[%c0_9, %c0_10], %14 {strides = array<i32>} : memref<1x128xf32, #tpu.memory_space<vmem>>, vector<1x128xf32>,
    %c0_i32_11 = arith.constant 0 : i32
    %16 = arith.cmpi eq, %arg1, %c0_i32_11 : i32
    %17 = arith.extui %16 : i1 to i32
    %c0_i32_12 = arith.constant 0 : i32
    %18 = arith.cmpi ne, %17, %c0_i32_12 : i32
    scf.if %18 {
      %c0_13 = arith.constant 0 : index
      %c0_14 = arith.constant 0 : index
      %19 = vector.load %arg5[%c0_13, %c0_14] : memref<1x128xf32, #tpu.memory_space<vmem>>, vector<1x128xf32>
      %cst_15 = arith.constant 7.812500e-03 : f32
      %20 = vector.broadcast %cst_15 : f32 to vector<1x128xf32>
      %21 = arith.mulf %19, %20 : vector<1x128xf32>
      %c0_16 = arith.constant 0 : index
      %c0_17 = arith.constant 0 : index
      %22 = vector.load %arg6[%c0_16, %c0_17] : memref<1x128xf32, #tpu.memory_space<vmem>>, vector<1x128xf32>
      %cst_18 = arith.constant 7.812500e-03 : f32
      %23 = vector.broadcast %cst_18 : f32 to vector<1x128xf32>
      %24 = arith.mulf %22, %23 : vector<1x128xf32>
      %25 = arith.mulf %21, %21 : vector<1x128xf32>
      %26 = arith.subf %24, %25 : vector<1x128xf32>
      %cst_19 = arith.constant 0.000000e+00 : f32
      %27 = vector.broadcast %cst_19 : f32 to vector<1x128xf32>
      %28 = arith.maximumf %26, %27 : vector<1x128xf32>
      %c0_20 = arith.constant 0 : index
      %c0_21 = arith.constant 0 : index
      %29 = vector.load %arg3[%c0_20, %c0_21] : memref<1x128xf32, #tpu.memory_space<vmem>>, vector<1x128xf32>
      tpu.vector_store %arg3[%c0_20, %c0_21], %21 {strides = array<i32>} : memref<1x128xf32, #tpu.memory_space<vmem>>, vector<1x128xf32>,
      %cst_22 = arith.constant 9.99999974E-6 : f32
      %30 = vector.broadcast %cst_22 : f32 to vector<1x128xf32>
      %31 = arith.addf %28, %30 : vector<1x128xf32>
      %32 = math.rsqrt %31 : vector<1x128xf32>
      %c0_23 = arith.constant 0 : index
      %c0_24 = arith.constant 0 : index
      %33 = vector.load %arg4[%c0_23, %c0_24] : memref<1x128xf32, #tpu.memory_space<vmem>>, vector<1x128xf32>
      tpu.vector_store %arg4[%c0_23, %c0_24], %32 {strides = array<i32>} : memref<1x128xf32, #tpu.memory_space<vmem>>, vector<1x128xf32>,
    } else {
    }
    return
  }
  func.func @transform_0(%arg0: i32, %arg1: i32) -> (i32, i32) {
    %c0_i32 = arith.constant 0 : i32
    return %arg1, %arg0 : i32, i32
  }
  func.func @transform_1(%arg0: i32, %arg1: i32) -> (i32, i32) {
    %c0_i32 = arith.constant 0 : i32
    %c0_i32_0 = arith.constant 0 : i32
    return %c0_i32, %arg0 : i32, i32
  }
  func.func @transform_2(%arg0: i32, %arg1: i32) -> (i32, i32) {
    %c0_i32 = arith.constant 0 : i32
    %c0_i32_0 = arith.constant 0 : i32
    return %c0_i32, %arg0 : i32, i32
  }
}

module attributes {stable_mosaic.version = 11 : i64} {
  func.func @_bn_norm_kernel(%arg0: i32, %arg1: i32, %arg2: memref<128x128xbf16, #tpu.memory_space<vmem>>, %arg3: memref<1x128xf32, #tpu.memory_space<vmem>>, %arg4: memref<1x128xf32, #tpu.memory_space<vmem>>, %arg5: memref<128x128xbf16, #tpu.memory_space<vmem>>) attributes {dimension_semantics = [#tpu.dimension_semantics<parallel>, #tpu.dimension_semantics<parallel>], iteration_bounds = array<i64: 1, 1>, scalar_prefetch = 0 : i64, scratch_operands = 0 : i64, tpu.core_type = #tpu.core_type<tc>, window_params = [{transform_indices = @transform_0, window_bounds = array<i64: 128, 128>}, {transform_indices = @transform_1, window_bounds = array<i64: 1, 128>}, {transform_indices = @transform_2, window_bounds = array<i64: 1, 128>}, {transform_indices = @transform_3, window_bounds = array<i64: 128, 128>}]} {
    %c0 = arith.constant 0 : index
    %c0_0 = arith.constant 0 : index
    %0 = vector.load %arg2[%c0, %c0_0] : memref<128x128xbf16, #tpu.memory_space<vmem>>, vector<128x128xbf16>
    %1 = arith.extf %0 : vector<128x128xbf16> to vector<128x128xf32>
    %c0_1 = arith.constant 0 : index
    %c0_2 = arith.constant 0 : index
    %2 = vector.load %arg3[%c0_1, %c0_2] : memref<1x128xf32, #tpu.memory_space<vmem>>, vector<1x128xf32>
    %3 = vector.broadcast %2 : vector<1x128xf32> to vector<128x128xf32>
    %4 = arith.subf %1, %3 : vector<128x128xf32>
    %c0_3 = arith.constant 0 : index
    %c0_4 = arith.constant 0 : index
    %5 = vector.load %arg4[%c0_3, %c0_4] : memref<1x128xf32, #tpu.memory_space<vmem>>, vector<1x128xf32>
    %6 = vector.broadcast %5 : vector<1x128xf32> to vector<128x128xf32>
    %7 = arith.mulf %4, %6 : vector<128x128xf32>
    %cst = arith.constant 0.000000e+00 : f32
    %8 = vector.broadcast %cst : f32 to vector<128x128xf32>
    %9 = arith.cmpf oge, %7, %8 : vector<128x128xf32>
    %cst_5 = arith.constant 1.000000e-01 : f32
    %10 = vector.broadcast %cst_5 : f32 to vector<128x128xf32>
    %11 = arith.mulf %10, %7 : vector<128x128xf32>
    %12 = arith.select %9, %7, %11 : vector<128x128xi1>, vector<128x128xf32>
    %13 = arith.truncf %12 : vector<128x128xf32> to vector<128x128xbf16>
    %c0_6 = arith.constant 0 : index
    %c0_7 = arith.constant 0 : index
    %14 = vector.load %arg5[%c0_6, %c0_7] : memref<128x128xbf16, #tpu.memory_space<vmem>>, vector<128x128xbf16>
    tpu.vector_store %arg5[%c0_6, %c0_7], %13 {strides = array<i32>} : memref<128x128xbf16, #tpu.memory_space<vmem>>, vector<128x128xbf16>,
    return
  }
  func.func @transform_0(%arg0: i32, %arg1: i32) -> (i32, i32) {
    %c0_i32 = arith.constant 0 : i32
    return %arg0, %arg1 : i32, i32
  }
  func.func @transform_1(%arg0: i32, %arg1: i32) -> (i32, i32) {
    %c0_i32 = arith.constant 0 : i32
    %c0_i32_0 = arith.constant 0 : i32
    return %c0_i32, %arg1 : i32, i32
  }
  func.func @transform_2(%arg0: i32, %arg1: i32) -> (i32, i32) {
    %c0_i32 = arith.constant 0 : i32
    %c0_i32_0 = arith.constant 0 : i32
    return %c0_i32, %arg1 : i32, i32
  }
  func.func @transform_3(%arg0: i32, %arg1: i32) -> (i32, i32) {
    %c0_i32 = arith.constant 0 : i32
    return %arg0, %arg1 : i32, i32
  }
}

module attributes {stable_mosaic.version = 11 : i64} {
  func.func @_matmul_bias_act_kernel(%arg0: i32, %arg1: i32, %arg2: i32, %arg3: memref<128x640xbf16, #tpu.memory_space<vmem>>, %arg4: memref<640x128xbf16, #tpu.memory_space<vmem>>, %arg5: memref<1x128xf32, #tpu.memory_space<vmem>>, %arg6: memref<128x128xf32, #tpu.memory_space<vmem>>, %arg7: memref<128x128xf32, #tpu.memory_space<vmem>>) attributes {dimension_semantics = [#tpu.dimension_semantics<parallel>, #tpu.dimension_semantics<parallel>, #tpu.dimension_semantics<arbitrary>], iteration_bounds = array<i64: 1, 1, 1>, scalar_prefetch = 0 : i64, scratch_operands = 1 : i64, tpu.core_type = #tpu.core_type<tc>, window_params = [{transform_indices = @transform_0, window_bounds = array<i64: 128, 640>}, {transform_indices = @transform_1, window_bounds = array<i64: 640, 128>}, {transform_indices = @transform_2, window_bounds = array<i64: 1, 128>}, {transform_indices = @transform_3, window_bounds = array<i64: 128, 128>}]} {
    %c0_i32 = arith.constant 0 : i32
    %0 = arith.cmpi eq, %arg2, %c0_i32 : i32
    %1 = arith.extui %0 : i1 to i32
    %c0_i32_0 = arith.constant 0 : i32
    %2 = arith.cmpi ne, %1, %c0_i32_0 : i32
    scf.if %2 {
      %cst_10 = arith.constant 0.000000e+00 : f32
      %12 = vector.broadcast %cst_10 : f32 to vector<128x128xf32>
      %c0_11 = arith.constant 0 : index
      %c0_12 = arith.constant 0 : index
      %13 = vector.load %arg7[%c0_11, %c0_12] : memref<128x128xf32, #tpu.memory_space<vmem>>, vector<128x128xf32>
      tpu.vector_store %arg7[%c0_11, %c0_12], %12 {strides = array<i32>} : memref<128x128xf32, #tpu.memory_space<vmem>>, vector<128x128xf32>,
    } else {
    }
    %c0 = arith.constant 0 : index
    %c0_1 = arith.constant 0 : index
    %3 = vector.load %arg7[%c0, %c0_1] : memref<128x128xf32, #tpu.memory_space<vmem>>, vector<128x128xf32>
    %c0_2 = arith.constant 0 : index
    %c0_3 = arith.constant 0 : index
    %4 = vector.load %arg3[%c0_2, %c0_3] : memref<128x640xbf16, #tpu.memory_space<vmem>>, vector<128x640xbf16>
    %c0_4 = arith.constant 0 : index
    %c0_5 = arith.constant 0 : index
    %5 = vector.load %arg4[%c0_4, %c0_5] : memref<640x128xbf16, #tpu.memory_space<vmem>>, vector<640x128xbf16>
    %cst = arith.constant dense<0.000000e+00> : vector<128x128xf32>
    %6 = tpu.matmul %4, %5, %cst {dimension_numbers = #tpu.dot_dimension_numbers<[1], [0], [0], [1], [0, 0, 1, 1], [], []>} : vector<128x640xbf16>, vector<640x128xbf16>, vector<128x128xf32> -> vector<128x128xf32>
    %7 = arith.addf %3, %6 : vector<128x128xf32>
    %c0_6 = arith.constant 0 : index
    %c0_7 = arith.constant 0 : index
    %8 = vector.load %arg7[%c0_6, %c0_7] : memref<128x128xf32, #tpu.memory_space<vmem>>, vector<128x128xf32>
    tpu.vector_store %arg7[%c0_6, %c0_7], %7 {strides = array<i32>} : memref<128x128xf32, #tpu.memory_space<vmem>>, vector<128x128xf32>,
    %c0_i32_8 = arith.constant 0 : i32
    %9 = arith.cmpi eq, %arg2, %c0_i32_8 : i32
    %10 = arith.extui %9 : i1 to i32
    %c0_i32_9 = arith.constant 0 : i32
    %11 = arith.cmpi ne, %10, %c0_i32_9 : i32
    scf.if %11 {
      %c0_10 = arith.constant 0 : index
      %c0_11 = arith.constant 0 : index
      %12 = vector.load %arg7[%c0_10, %c0_11] : memref<128x128xf32, #tpu.memory_space<vmem>>, vector<128x128xf32>
      %c0_12 = arith.constant 0 : index
      %c0_13 = arith.constant 0 : index
      %13 = vector.load %arg5[%c0_12, %c0_13] : memref<1x128xf32, #tpu.memory_space<vmem>>, vector<1x128xf32>
      %14 = vector.broadcast %13 : vector<1x128xf32> to vector<128x128xf32>
      %15 = arith.addf %12, %14 : vector<128x128xf32>
      %cst_14 = arith.constant 0.000000e+00 : f32
      %16 = vector.broadcast %cst_14 : f32 to vector<128x128xf32>
      %17 = arith.maximumf %15, %16 : vector<128x128xf32>
      %c0_15 = arith.constant 0 : index
      %c0_16 = arith.constant 0 : index
      %18 = vector.load %arg6[%c0_15, %c0_16] : memref<128x128xf32, #tpu.memory_space<vmem>>, vector<128x128xf32>
      tpu.vector_store %arg6[%c0_15, %c0_16], %17 {strides = array<i32>} : memref<128x128xf32, #tpu.memory_space<vmem>>, vector<128x128xf32>,
    } else {
    }
    return
  }
  func.func @transform_0(%arg0: i32, %arg1: i32, %arg2: i32) -> (i32, i32) {
    %c0_i32 = arith.constant 0 : i32
    return %arg0, %arg2 : i32, i32
  }
  func.func @transform_1(%arg0: i32, %arg1: i32, %arg2: i32) -> (i32, i32) {
    %c0_i32 = arith.constant 0 : i32
    return %arg2, %arg1 : i32, i32
  }
  func.func @transform_2(%arg0: i32, %arg1: i32, %arg2: i32) -> (i32, i32) {
    %c0_i32 = arith.constant 0 : i32
    %c0_i32_0 = arith.constant 0 : i32
    return %c0_i32, %arg1 : i32, i32
  }
  func.func @transform_3(%arg0: i32, %arg1: i32, %arg2: i32) -> (i32, i32) {
    %c0_i32 = arith.constant 0 : i32
    return %arg0, %arg1 : i32, i32
  }
}

</mosaic_0001>

<llo_original>
// kernel: forward.5
$region0: #{forward.5}
  #allocation0 [shape = 'u32[]', space=smem, size = 0x4, offset = 0x4, fixed_abs, tag = 'smem constant byte address 0x4 - core index']
  #allocation1 [shape = 'u32[72,128]{1,0:T(1,128)}', space=vmem, size = 0x9000, scoped, tag = 'internal scratch']
  #allocation2 [shape = 'f32[1,128]{1,0:T(1,128)}', space=vmem, size = 0x200, scoped, tag = 'scratch operand']
  #allocation3 [shape = 'f32[1,128]{1,0:T(1,128)}', space=vmem, size = 0x200, scoped, tag = 'scratch operand']
  %s0 = inlined_call_operand.vmem [shape: bf16[128,128], index: 0, kind: input, shape index: {}]
  %s1 = inlined_call_operand.vmem [shape: f32[1,128], index: 1, kind: output, shape index: {0}]
  %s2 = inlined_call_operand.vmem [shape: f32[1,128], index: 2, kind: output, shape index: {1}]
  %3 = xla_tuple %s1, %s2
  %s4 = sld [smem:[#allocation0]]
  $region30: #{forward.5} parent=0
    _
  %s6 = ssub.s32 1, %s4
  %s7 = scalar_select 0, %s6, %s4
  // Predicated region
  $region2: #{forward.5} parent=0 // pred_check
    _
  $region3: #{forward.5} parent=0 // pred_check_branch
    %9 = sbr.rel (0) target = $region5
  $region4: #{forward.5} parent=0 // pred_region
    _
  $region5: #{forward.5} parent=0 // pred_fallthru
    _
  %p10 = scmp.eq.s32.totalorder 0, 0
  // Predicated region
  $region6: #{forward.5} parent=0 // pred_check
    %p11 = pneg %p10
  $region7: #{forward.5} parent=0 // pred_check_branch
    %13 = sbr.rel (%p11) target = $region9
  $region8: #{forward.5} parent=0 // pred_region
    %14 = vst [vmem:[#allocation2] sm:$0x1] 0.0
    %15 = vst [vmem:[#allocation3] sm:$0x1] 0.0
  $region9: #{forward.5} parent=0 // pred_fallthru
    _
  %v16 = vld [vmem:[%s0] sm:$0xf]
  %v17 = vld [vmem:[%s0 + $0x4] sm:$0xf]
  %v18 = vld [vmem:[%s0 + $0x8] sm:$0xf]
  %v19 = vld [vmem:[%s0 + $0xc] sm:$0xf]
  %v20 = vld [vmem:[%s0 + $0x10] sm:$0xf]
  %v21 = vld [vmem:[%s0 + $0x14] sm:$0xf]
  %v22 = vld [vmem:[%s0 + $0x18] sm:$0xf]
  %v23 = vld [vmem:[%s0 + $0x1c] sm:$0xf]
  %v24 = vld [vmem:[%s0 + $0x20] sm:$0xf]
  %v25 = vld [vmem:[%s0 + $0x24] sm:$0xf]
  %v26 = vld [vmem:[%s0 + $0x28] sm:$0xf]
  %v27 = vld [vmem:[%s0 + $0x2c] sm:$0xf]
  %v28 = vld [vmem:[%s0 + $0x30] sm:$0xf]
  %v29 = vld [vmem:[%s0 + $0x34] sm:$0xf]
  %v30 = vld [vmem:[%s0 + $0x38] sm:$0xf]
  %v31 = vld [vmem:[%s0 + $0x3c] sm:$0xf]
  %v32 = vunpack.c.l.bf16 %v16
  %v33 = vunpack.c.l.bf16 %v17
  %v34 = vunpack.c.l.bf16 %v18
  %v35 = vunpack.c.l.bf16 %v19
  %v36 = vunpack.c.l.bf16 %v20
  %v37 = vunpack.c.l.bf16 %v21
  %v38 = vunpack.c.l.bf16 %v22
  %v39 = vunpack.c.l.bf16 %v23
  %v40 = vunpack.c.l.bf16 %v24
  %v41 = vunpack.c.l.bf16 %v25
  %v42 = vunpack.c.l.bf16 %v26
  %v43 = vunpack.c.l.bf16 %v27
  %v44 = vunpack.c.l.bf16 %v28
  %v45 = vunpack.c.l.bf16 %v29
  %v46 = vunpack.c.l.bf16 %v30
  %v47 = vunpack.c.l.bf16 %v31
  %v48 = vld [vmem:[#allocation2] sm:$0x1]
  %v49 = vadd.f32 %v32, %v33
  %v50 = vadd.f32 %v49, %v34
  %v51 = vadd.f32 %v50, %v35
  %v52 = vadd.f32 %v51, %v36
  %v53 = vadd.f32 %v52, %v37
  %v54 = vadd.f32 %v53, %v38
  %v55 = vadd.f32 %v54, %v39
  %v56 = vadd.f32 %v55, %v40
  %v57 = vadd.f32 %v56, %v41
  %v58 = vadd.f32 %v57, %v42
  %v59 = vadd.f32 %v58, %v43
  %v60 = vadd.f32 %v59, %v44
  %v61 = vadd.f32 %v60, %v45
  %v62 = vadd.f32 %v61, %v46
  %v63 = vadd.f32 %v62, %v47
  %v64 = vrot.slane %v63, 4
  %v65 = vadd.f32 %v63, %v64
  %v66 = vrot.slane %v65, 2
  %v67 = vadd.f32 %v65, %v66
  %v68 = vrot.slane %v67, 1
  %v69 = vadd.f32 %v67, %v68
  %v70 = vadd.f32 %v48, %v69
  %71 = vst [vmem:[#allocation2] sm:$0x1] %v70
  %v72 = vld [vmem:[#allocation3] sm:$0x1]
  %v73 = vmul.f32 %v32, %v32
  %v74 = vmul.f32 %v33, %v33
  %v75 = vmul.f32 %v34, %v34
  %v76 = vmul.f32 %v35, %v35
  %v77 = vmul.f32 %v36, %v36
  %v78 = vmul.f32 %v37, %v37
  %v79 = vmul.f32 %v38, %v38
  %v80 = vmul.f32 %v39, %v39
  %v81 = vmul.f32 %v40, %v40
  %v82 = vmul.f32 %v41, %v41
  %v83 = vmul.f32 %v42, %v42
  %v84 = vmul.f32 %v43, %v43
  %v85 = vmul.f32 %v44, %v44
  %v86 = vmul.f32 %v45, %v45
  %v87 = vmul.f32 %v46, %v46
  %v88 = vmul.f32 %v47, %v47
  %v89 = vadd.f32 %v73, %v74
  %v90 = vadd.f32 %v89, %v75
  %v91 = vadd.f32 %v90, %v76
  %v92 = vadd.f32 %v91, %v77
  %v93 = vadd.f32 %v92, %v78
  %v94 = vadd.f32 %v93, %v79
  %v95 = vadd.f32 %v94, %v80
  %v96 = vadd.f32 %v95, %v81
  %v97 = vadd.f32 %v96, %v82
  %v98 = vadd.f32 %v97, %v83
  %v99 = vadd.f32 %v98, %v84
  %v100 = vadd.f32 %v99, %v85
  %v101 = vadd.f32 %v100, %v86
  %v102 = vadd.f32 %v101, %v87
  %v103 = vadd.f32 %v102, %v88
  %v104 = vrot.slane %v103, 4
  %v105 = vadd.f32 %v103, %v104
  %v106 = vrot.slane %v105, 2
  %v107 = vadd.f32 %v105, %v106
  %v108 = vrot.slane %v107, 1
  %v109 = vadd.f32 %v107, %v108
  %v110 = vadd.f32 %v72, %v109
  %111 = vst [vmem:[#allocation3] sm:$0x1] %v110
  // Predicated region
  $region10: #{forward.5} parent=0 // pred_check
    %p112 = pneg %p10
  $region11: #{forward.5} parent=0 // pred_check_branch
    %114 = sbr.rel (%p112) target = $region13
  $region12: #{forward.5} parent=0 // pred_region
    %v115 = vld [vmem:[#allocation2] sm:$0x1]
    %v116 = vmul.f32 %v115, 0.0078125
    %v117 = vld [vmem:[#allocation3] sm:$0x1]
    %v118 = vmul.f32 %v117, 0.0078125
    %v119 = vmul.f32 %v116, %v116
    %v120 = vsub.f32 %v118, %v119
    %v121 = vmax.f32 %v120, 0.0
    %122 = vst [vmem:[%s1] sm:$0x1] %v116
    %v123 = vadd.f32 %v121, 1e-05
    %v124 = vrsqrt.pop %v123
    %v125 = vmul.f32 %v124, %v123
    %v126 = vmul.f32 %v125, %v124
    %v127 = vmul.f32 0.5, %v126
    %v128 = vsub.f32 1.5, %v127
    %v129 = vmul.f32 %v124, %v128
    %vm130 = vweird.f32 %v123
    %vm131 = vweird.f32 %v124
    %vm132 = vmor %vm130, %vm131
    %v133 = vsel %vm132, %v124, %v129
    %134 = vst [vmem:[%s2] sm:$0x1] %v133
  $region13: #{forward.5} parent=0 // pred_fallthru
    _
  // Predicated region
  $region14: #{forward.5} parent=0 // pred_check
    _
  $region15: #{forward.5} parent=0 // pred_check_branch
    %136 = sbr.rel (0) target = $region17
  $region16: #{forward.5} parent=0 // pred_region
    _
  $region17: #{forward.5} parent=0 // pred_fallthru
    _
  // Predicated region
  $region18: #{forward.5} parent=0 // pred_check
    _
  $region19: #{forward.5} parent=0 // pred_check_branch
    %138 = sbr.rel (0) target = $region21
  $region20: #{forward.5} parent=0 // pred_region
    _
  $region21: #{forward.5} parent=0 // pred_fallthru
    _
  // Predicated region
  $region22: #{forward.5} parent=0 // pred_check
    _
  $region23: #{forward.5} parent=0 // pred_check_branch
    %140 = sbr.rel (0) target = $region25
  $region24: #{forward.5} parent=0 // pred_region
    _
  $region25: #{forward.5} parent=0 // pred_fallthru
    _
  // Predicated region
  $region26: #{forward.5} parent=0 // pred_check
    _
  $region27: #{forward.5} parent=0 // pred_check_branch
    %142 = sbr.rel (0) target = $region29
  $region28: #{forward.5} parent=0 // pred_region
    _
  $region29: #{forward.5} parent=0 // pred_fallthru
    _

// kernel: forward.6
$region0: #{forward.6}
  #allocation0 [shape = 'u32[]', space=smem, size = 0x4, offset = 0x4, fixed_abs, tag = 'smem constant byte address 0x4 - core index']
  #allocation1 [shape = 'u32[72,128]{1,0:T(1,128)}', space=vmem, size = 0x9000, scoped, tag = 'internal scratch']
  %s0 = inlined_call_operand.vmem [shape: bf16[128,128], index: 0, kind: input, shape index: {}]
  %s1 = inlined_call_operand.vmem [shape: f32[1,128], index: 1, kind: input, shape index: {}]
  %s2 = inlined_call_operand.vmem [shape: f32[1,128], index: 2, kind: input, shape index: {}]
  %s3 = inlined_call_operand.vmem [shape: bf16[128,128], index: 3, kind: output, shape index: {}]
  %s4 = sld [smem:[#allocation0]]
  $region22: #{forward.6} parent=0
    _
  %s6 = ssub.s32 1, %s4
  %s7 = scalar_select 0, %s6, %s4
  // Predicated region
  $region2: #{forward.6} parent=0 // pred_check
    _
  $region3: #{forward.6} parent=0 // pred_check_branch
    %9 = sbr.rel (0) target = $region5
  $region4: #{forward.6} parent=0 // pred_region
    _
  $region5: #{forward.6} parent=0 // pred_fallthru
    _
  // Predicated region
  $region6: #{forward.6} parent=0 // pred_check
    _
  $region7: #{forward.6} parent=0 // pred_check_branch
    %11 = sbr.rel (0) target = $region9
  $region8: #{forward.6} parent=0 // pred_region
    _
  $region9: #{forward.6} parent=0 // pred_fallthru
    _
  // Predicated region
  $region10: #{forward.6} parent=0 // pred_check
    _
  $region11: #{forward.6} parent=0 // pred_check_branch
    %13 = sbr.rel (0) target = $region13
  $region12: #{forward.6} parent=0 // pred_region
    _
  $region13: #{forward.6} parent=0 // pred_fallthru
    _
  %v14 = vld [vmem:[%s0] sm:$0xf]
  %v15 = vld [vmem:[%s0 + $0x4] sm:$0xf]
  %v16 = vld [vmem:[%s0 + $0x8] sm:$0xf]
  %v17 = vld [vmem:[%s0 + $0xc] sm:$0xf]
  %v18 = vld [vmem:[%s0 + $0x10] sm:$0xf]
  %v19 = vld [vmem:[%s0 + $0x14] sm:$0xf]
  %v20 = vld [vmem:[%s0 + $0x18] sm:$0xf]
  %v21 = vld [vmem:[%s0 + $0x1c] sm:$0xf]
  %v22 = vld [vmem:[%s0 + $0x20] sm:$0xf]
  %v23 = vld [vmem:[%s0 + $0x24] sm:$0xf]
  %v24 = vld [vmem:[%s0 + $0x28] sm:$0xf]
  %v25 = vld [vmem:[%s0 + $0x2c] sm:$0xf]
  %v26 = vld [vmem:[%s0 + $0x30] sm:$0xf]
  %v27 = vld [vmem:[%s0 + $0x34] sm:$0xf]
  %v28 = vld [vmem:[%s0 + $0x38] sm:$0xf]
  %v29 = vld [vmem:[%s0 + $0x3c] sm:$0xf]
  %v30 = vunpack.c.l.bf16 %v14
  %v31 = vunpack.c.l.bf16 %v15
  %v32 = vunpack.c.l.bf16 %v16
  %v33 = vunpack.c.l.bf16 %v17
  %v34 = vunpack.c.l.bf16 %v18
  %v35 = vunpack.c.l.bf16 %v19
  %v36 = vunpack.c.l.bf16 %v20
  %v37 = vunpack.c.l.bf16 %v21
  %v38 = vunpack.c.l.bf16 %v22
  %v39 = vunpack.c.l.bf16 %v23
  %v40 = vunpack.c.l.bf16 %v24
  %v41 = vunpack.c.l.bf16 %v25
  %v42 = vunpack.c.l.bf16 %v26
  %v43 = vunpack.c.l.bf16 %v27
  %v44 = vunpack.c.l.bf16 %v28
  %v45 = vunpack.c.l.bf16 %v29
  %v46 = vld [vmem:[%s1] sm:$0x1]
  %v48 = vperm.slane %v46, 0
  %v50 = vsub.f32 %v30, %v48
  %v51 = vsub.f32 %v31, %v48
  %v52 = vsub.f32 %v32, %v48
  %v53 = vsub.f32 %v33, %v48
  %v54 = vsub.f32 %v34, %v48
  %v55 = vsub.f32 %v35, %v48
  %v56 = vsub.f32 %v36, %v48
  %v57 = vsub.f32 %v37, %v48
  %v58 = vsub.f32 %v38, %v48
  %v59 = vsub.f32 %v39, %v48
  %v60 = vsub.f32 %v40, %v48
  %v61 = vsub.f32 %v41, %v48
  %v62 = vsub.f32 %v42, %v48
  %v63 = vsub.f32 %v43, %v48
  %v64 = vsub.f32 %v44, %v48
  %v65 = vsub.f32 %v45, %v48
  %v66 = vld [vmem:[%s2] sm:$0x1]
  %v68 = vperm.slane %v66, 0
  %v70 = vmul.f32 %v50, %v68
  %v71 = vmul.f32 %v51, %v68
  %v72 = vmul.f32 %v52, %v68
  %v73 = vmul.f32 %v53, %v68
  %v74 = vmul.f32 %v54, %v68
  %v75 = vmul.f32 %v55, %v68
  %v76 = vmul.f32 %v56, %v68
  %v77 = vmul.f32 %v57, %v68
  %v78 = vmul.f32 %v58, %v68
  %v79 = vmul.f32 %v59, %v68
  %v80 = vmul.f32 %v60, %v68
  %v81 = vmul.f32 %v61, %v68
  %v82 = vmul.f32 %v62, %v68
  %v83 = vmul.f32 %v63, %v68
  %v84 = vmul.f32 %v64, %v68
  %v85 = vmul.f32 %v65, %v68
  %vm86 = vcmp.ge.f32.partialorder %v70, 0.0
  %vm87 = vcmp.ge.f32.partialorder %v71, 0.0
  %vm88 = vcmp.ge.f32.partialorder %v72, 0.0
  %vm89 = vcmp.ge.f32.partialorder %v73, 0.0
  %vm90 = vcmp.ge.f32.partialorder %v74, 0.0
  %vm91 = vcmp.ge.f32.partialorder %v75, 0.0
  %vm92 = vcmp.ge.f32.partialorder %v76, 0.0
  %vm93 = vcmp.ge.f32.partialorder %v77, 0.0
  %vm94 = vcmp.ge.f32.partialorder %v78, 0.0
  %vm95 = vcmp.ge.f32.partialorder %v79, 0.0
  %vm96 = vcmp.ge.f32.partialorder %v80, 0.0
  %vm97 = vcmp.ge.f32.partialorder %v81, 0.0
  %vm98 = vcmp.ge.f32.partialorder %v82, 0.0
  %vm99 = vcmp.ge.f32.partialorder %v83, 0.0
  %vm100 = vcmp.ge.f32.partialorder %v84, 0.0
  %vm101 = vcmp.ge.f32.partialorder %v85, 0.0
  %v102 = vmul.f32 %v70, 0.1
  %v103 = vmul.f32 %v71, 0.1
  %v104 = vmul.f32 %v72, 0.1
  %v105 = vmul.f32 %v73, 0.1
  %v106 = vmul.f32 %v74, 0.1
  %v107 = vmul.f32 %v75, 0.1
  %v108 = vmul.f32 %v76, 0.1
  %v109 = vmul.f32 %v77, 0.1
  %v110 = vmul.f32 %v78, 0.1
  %v111 = vmul.f32 %v79, 0.1
  %v112 = vmul.f32 %v80, 0.1
  %v113 = vmul.f32 %v81, 0.1
  %v114 = vmul.f32 %v82, 0.1
  %v115 = vmul.f32 %v83, 0.1
  %v116 = vmul.f32 %v84, 0.1
  %v117 = vmul.f32 %v85, 0.1
  %v118 = vsel %vm86, %v70, %v102
  %v119 = vsel %vm87, %v71, %v103
  %v120 = vsel %vm88, %v72, %v104
  %v121 = vsel %vm89, %v73, %v105
  %v122 = vsel %vm90, %v74, %v106
  %v123 = vsel %vm91, %v75, %v107
  %v124 = vsel %vm92, %v76, %v108
  %v125 = vsel %vm93, %v77, %v109
  %v126 = vsel %vm94, %v78, %v110
  %v127 = vsel %vm95, %v79, %v111
  %v128 = vsel %vm96, %v80, %v112
  %v129 = vsel %vm97, %v81, %v113
  %v130 = vsel %vm98, %v82, %v114
  %v131 = vsel %vm99, %v83, %v115
  %v132 = vsel %vm100, %v84, %v116
  %v133 = vsel %vm101, %v85, %v117
  %v134 = vpack.c.bf16 %v118, %v118
  %v135 = vpack.c.bf16 %v119, %v119
  %v136 = vpack.c.bf16 %v120, %v120
  %v137 = vpack.c.bf16 %v121, %v121
  %v138 = vpack.c.bf16 %v122, %v122
  %v139 = vpack.c.bf16 %v123, %v123
  %v140 = vpack.c.bf16 %v124, %v124
  %v141 = vpack.c.bf16 %v125, %v125
  %v142 = vpack.c.bf16 %v126, %v126
  %v143 = vpack.c.bf16 %v127, %v127
  %v144 = vpack.c.bf16 %v128, %v128
  %v145 = vpack.c.bf16 %v129, %v129
  %v146 = vpack.c.bf16 %v130, %v130
  %v147 = vpack.c.bf16 %v131, %v131
  %v148 = vpack.c.bf16 %v132, %v132
  %v149 = vpack.c.bf16 %v133, %v133
  %150 = vst [vmem:[%s3] sm:$0xf] %v134
  %151 = vst [vmem:[%s3 + $0x4] sm:$0xf] %v135
  %152 = vst [vmem:[%s3 + $0x8] sm:$0xf] %v136
  %153 = vst [vmem:[%s3 + $0xc] sm:$0xf] %v137
  %154 = vst [vmem:[%s3 + $0x10] sm:$0xf] %v138
  %155 = vst [vmem:[%s3 + $0x14] sm:$0xf] %v139
  %156 = vst [vmem:[%s3 + $0x18] sm:$0xf] %v140
  %157 = vst [vmem:[%s3 + $0x1c] sm:$0xf] %v141
  %158 = vst [vmem:[%s3 + $0x20] sm:$0xf] %v142
  %159 = vst [vmem:[%s3 + $0x24] sm:$0xf] %v143
  %160 = vst [vmem:[%s3 + $0x28] sm:$0xf] %v144
  %161 = vst [vmem:[%s3 + $0x2c] sm:$0xf] %v145
  %162 = vst [vmem:[%s3 + $0x30] sm:$0xf] %v146
  %163 = vst [vmem:[%s3 + $0x34] sm:$0xf] %v147
  %164 = vst [vmem:[%s3 + $0x38] sm:$0xf] %v148
  %165 = vst [vmem:[%s3 + $0x3c] sm:$0xf] %v149
  // Predicated region
  $region14: #{forward.6} parent=0 // pred_check
    _
  $region15: #{forward.6} parent=0 // pred_check_branch
    %167 = sbr.rel (0) target = $region17
  $region16: #{forward.6} parent=0 // pred_region
    _
  $region17: #{forward.6} parent=0 // pred_fallthru
    _
  // Predicated region
  $region18: #{forward.6} parent=0 // pred_check
    _
  $region19: #{forward.6} parent=0 // pred_check_branch
    %169 = sbr.rel (0) target = $region21
  $region20: #{forward.6} parent=0 // pred_region
    _
  $region21: #{forward.6} parent=0 // pred_fallthru
    _

// kernel: forward.4
$region0: #{forward.4}
  #allocation0 [shape = 'u32[]', space=smem, size = 0x4, offset = 0x4, fixed_abs, tag = 'smem constant byte address 0x4 - core index']
  #allocation1 [shape = 'u32[72,128]{1,0:T(1,128)}', space=vmem, size = 0x9000, scoped, tag = 'internal scratch']
  #allocation2 [shape = 'f32[128,128]{1,0:T(8,128)}', space=vmem, size = 0x10000, scoped, tag = 'scratch operand']
  %s0 = inlined_call_operand.vmem [shape: bf16[128,128], index: 0, kind: input, shape index: {}]
  %s1 = inlined_call_operand.vmem [shape: bf16[128,128], index: 1, kind: input, shape index: {}]
  %s2 = inlined_call_operand.vmem [shape: bf16[128,128], index: 2, kind: output, shape index: {}]
  %s3 = sld [smem:[#allocation0]]
  $region26: #{forward.4} parent=0
    _
  %s5 = ssub.s32 1, %s3
  %s6 = scalar_select 0, %s5, %s3
  // Predicated region
  $region2: #{forward.4} parent=0 // pred_check
    _
  $region3: #{forward.4} parent=0 // pred_check_branch
    %8 = sbr.rel (0) target = $region5
  $region4: #{forward.4} parent=0 // pred_region
    _
  $region5: #{forward.4} parent=0 // pred_fallthru
    _
  // Predicated region
  $region6: #{forward.4} parent=0 // pred_check
    _
  $region7: #{forward.4} parent=0 // pred_check_branch
    %10 = sbr.rel (0) target = $region9
  $region8: #{forward.4} parent=0 // pred_region
    _
  $region9: #{forward.4} parent=0 // pred_fallthru
    _
  %p11 = scmp.eq.s32.totalorder 0, 0
  // Predicated region
  $region10: #{forward.4} parent=0 // pred_check
    %p12 = pneg %p11
  $region11: #{forward.4} parent=0 // pred_check_branch
    %14 = sbr.rel (%p12) target = $region13
  $region12: #{forward.4} parent=0 // pred_region
    %15 = vst [vmem:[#allocation2] sm:$0xff] 0.0
    %16 = vst [vmem:[#allocation2 + $0x8] sm:$0xff] 0.0
    %17 = vst [vmem:[#allocation2 + $0x10] sm:$0xff] 0.0
    %18 = vst [vmem:[#allocation2 + $0x18] sm:$0xff] 0.0
    %19 = vst [vmem:[#allocation2 + $0x20] sm:$0xff] 0.0
    %20 = vst [vmem:[#allocation2 + $0x28] sm:$0xff] 0.0
    %21 = vst [vmem:[#allocation2 + $0x30] sm:$0xff] 0.0
    %22 = vst [vmem:[#allocation2 + $0x38] sm:$0xff] 0.0
    %23 = vst [vmem:[#allocation2 + $0x40] sm:$0xff] 0.0
    %24 = vst [vmem:[#allocation2 + $0x48] sm:$0xff] 0.0
    %25 = vst [vmem:[#allocation2 + $0x50] sm:$0xff] 0.0
    %26 = vst [vmem:[#allocation2 + $0x58] sm:$0xff] 0.0
    %27 = vst [vmem:[#allocation2 + $0x60] sm:$0xff] 0.0
    %28 = vst [vmem:[#allocation2 + $0x68] sm:$0xff] 0.0
    %29 = vst [vmem:[#allocation2 + $0x70] sm:$0xff] 0.0
    %30 = vst [vmem:[#allocation2 + $0x78] sm:$0xff] 0.0
  $region13: #{forward.4} parent=0 // pred_fallthru
    _
  %v31 = vld [vmem:[#allocation2] sm:$0xff]
  %v32 = vld [vmem:[#allocation2 + $0x8] sm:$0xff]
  %v33 = vld [vmem:[#allocation2 + $0x10] sm:$0xff]
  %v34 = vld [vmem:[#allocation2 + $0x18] sm:$0xff]
  %v35 = vld [vmem:[#allocation2 + $0x20] sm:$0xff]
  %v36 = vld [vmem:[#allocation2 + $0x28] sm:$0xff]
  %v37 = vld [vmem:[#allocation2 + $0x30] sm:$0xff]
  %v38 = vld [vmem:[#allocation2 + $0x38] sm:$0xff]
  %v39 = vld [vmem:[#allocation2 + $0x40] sm:$0xff]
  %v40 = vld [vmem:[#allocation2 + $0x48] sm:$0xff]
  %v41 = vld [vmem:[#allocation2 + $0x50] sm:$0xff]
  %v42 = vld [vmem:[#allocation2 + $0x58] sm:$0xff]
  %v43 = vld [vmem:[#allocation2 + $0x60] sm:$0xff]
  %v44 = vld [vmem:[#allocation2 + $0x68] sm:$0xff]
  %v45 = vld [vmem:[#allocation2 + $0x70] sm:$0xff]
  %v46 = vld [vmem:[#allocation2 + $0x78] sm:$0xff]
  %v47 = vld [vmem:[%s0] sm:$0xf]
  %v48 = vld [vmem:[%s0 + $0x4] sm:$0xf]
  %v49 = vld [vmem:[%s0 + $0x8] sm:$0xf]
  %v50 = vld [vmem:[%s0 + $0xc] sm:$0xf]
  %v51 = vld [vmem:[%s0 + $0x10] sm:$0xf]
  %v52 = vld [vmem:[%s0 + $0x14] sm:$0xf]
  %v53 = vld [vmem:[%s0 + $0x18] sm:$0xf]
  %v54 = vld [vmem:[%s0 + $0x1c] sm:$0xf]
  %v55 = vld [vmem:[%s0 + $0x20] sm:$0xf]
  %v56 = vld [vmem:[%s0 + $0x24] sm:$0xf]
  %v57 = vld [vmem:[%s0 + $0x28] sm:$0xf]
  %v58 = vld [vmem:[%s0 + $0x2c] sm:$0xf]
  %v59 = vld [vmem:[%s0 + $0x30] sm:$0xf]
  %v60 = vld [vmem:[%s0 + $0x34] sm:$0xf]
  %v61 = vld [vmem:[%s0 + $0x38] sm:$0xf]
  %v62 = vld [vmem:[%s0 + $0x3c] sm:$0xf]
  %v63 = vld [vmem:[%s1] sm:$0xf]
  %v64 = vld [vmem:[%s1 + $0x4] sm:$0xf]
  %v65 = vld [vmem:[%s1 + $0x8] sm:$0xf]
  %v66 = vld [vmem:[%s1 + $0xc] sm:$0xf]
  %v67 = vld [vmem:[%s1 + $0x10] sm:$0xf]
  %v68 = vld [vmem:[%s1 + $0x14] sm:$0xf]
  %v69 = vld [vmem:[%s1 + $0x18] sm:$0xf]
  %v70 = vld [vmem:[%s1 + $0x1c] sm:$0xf]
  %v71 = vld [vmem:[%s1 + $0x20] sm:$0xf]
  %v72 = vld [vmem:[%s1 + $0x24] sm:$0xf]
  %v73 = vld [vmem:[%s1 + $0x28] sm:$0xf]
  %v74 = vld [vmem:[%s1 + $0x2c] sm:$0xf]
  %v75 = vld [vmem:[%s1 + $0x30] sm:$0xf]
  %v76 = vld [vmem:[%s1 + $0x34] sm:$0xf]
  %v77 = vld [vmem:[%s1 + $0x38] sm:$0xf]
  %v78 = vld [vmem:[%s1 + $0x3c] sm:$0xf]
  %v95 = vunpack.c.l.b16 %v47
  %v96 = vunpack.c.l.b16 %v48
  %v97 = vunpack.c.l.b16 %v49
  %v98 = vunpack.c.l.b16 %v50
  %v99 = vunpack.c.l.b16 %v51
  %v100 = vunpack.c.l.b16 %v52
  %v101 = vunpack.c.l.b16 %v53
  %v102 = vunpack.c.l.b16 %v54
  %v103 = vunpack.c.l.b16 %v55
  %v104 = vunpack.c.l.b16 %v56
  %v105 = vunpack.c.l.b16 %v57
  %v106 = vunpack.c.l.b16 %v58
  %v107 = vunpack.c.l.b16 %v59
  %v108 = vunpack.c.l.b16 %v60
  %v109 = vunpack.c.l.b16 %v61
  %v110 = vunpack.c.l.b16 %v62
  %v111 = vpack.c.b16 %v96, %v95
  %v112 = vpack.c.b16 %v98, %v97
  %v113 = vpack.c.b16 %v100, %v99
  %v114 = vpack.c.b16 %v102, %v101
  %v115 = vpack.c.b16 %v104, %v103
  %v116 = vpack.c.b16 %v106, %v105
  %v117 = vpack.c.b16 %v108, %v107
  %v118 = vpack.c.b16 %v110, %v109
  %v143 = vunpack.c.l.b16 %v63
  %v144 = vunpack.c.l.b16 %v64
  %v145 = vunpack.c.l.b16 %v65
  %v146 = vunpack.c.l.b16 %v66
  %v147 = vunpack.c.l.b16 %v67
  %v148 = vunpack.c.l.b16 %v68
  %v149 = vunpack.c.l.b16 %v69
  %v150 = vunpack.c.l.b16 %v70
  %v151 = vunpack.c.l.b16 %v71
  %v152 = vunpack.c.l.b16 %v72
  %v153 = vunpack.c.l.b16 %v73
  %v154 = vunpack.c.l.b16 %v74
  %v155 = vunpack.c.l.b16 %v75
  %v156 = vunpack.c.l.b16 %v76
  %v157 = vunpack.c.l.b16 %v77
  %v158 = vunpack.c.l.b16 %v78
  %v159 = vpack.c.b16 %v144, %v143
  %v160 = vpack.c.b16 %v146, %v145
  %v161 = vpack.c.b16 %v148, %v147
  %v162 = vpack.c.b16 %v150, %v149
  %v163 = vpack.c.b16 %v152, %v151
  %v164 = vpack.c.b16 %v154, %v153
  %v165 = vpack.c.b16 %v156, %v155
  %v166 = vpack.c.b16 %v158, %v157
  %175 = vmatpush.bf16.msra.mxu0 %v166
  %176 = vmatpush.bf16.msra.mxu0 %v165
  %177 = vmatpush.bf16.msra.mxu0 %v164
  %178 = vmatpush.bf16.msra.mxu0 %v163
  %179 = vmatpush.bf16.msra.mxu0 %v162
  %180 = vmatpush.bf16.msra.mxu0 %v161
  %181 = vmatpush.bf16.msra.mxu0 %v160
  %182 = vmatpush.bf16.msra.mxu0 %v159
  %183 = vmatmul.bf16.gmra.mxu0 %v111
  %v184 = vpop.f32.mrf.mxu0
  %v185 = vadd.f32 0.0, %v184
  %v186 = vpop.f32.mrf.mxu0
  %v187 = vadd.f32 0.0, %v186
  %188 = vmatmul.bf16.gmra.mxu0 %v112
  %v189 = vpop.f32.mrf.mxu0
  %v190 = vadd.f32 0.0, %v189
  %v191 = vpop.f32.mrf.mxu0
  %v192 = vadd.f32 0.0, %v191
  %193 = vmatmul.bf16.gmra.mxu0 %v113
  %v194 = vpop.f32.mrf.mxu0
  %v195 = vadd.f32 0.0, %v194
  %v196 = vpop.f32.mrf.mxu0
  %v197 = vadd.f32 0.0, %v196
  %198 = vmatmul.bf16.gmra.mxu0 %v114
  %v199 = vpop.f32.mrf.mxu0
  %v200 = vadd.f32 0.0, %v199
  %v201 = vpop.f32.mrf.mxu0
  %v202 = vadd.f32 0.0, %v201
  %203 = vmatmul.bf16.gmra.mxu0 %v115
  %v204 = vpop.f32.mrf.mxu0
  %v205 = vadd.f32 0.0, %v204
  %v206 = vpop.f32.mrf.mxu0
  %v207 = vadd.f32 0.0, %v206
  %208 = vmatmul.bf16.gmra.mxu0 %v116
  %v209 = vpop.f32.mrf.mxu0
  %v210 = vadd.f32 0.0, %v209
  %v211 = vpop.f32.mrf.mxu0
  %v212 = vadd.f32 0.0, %v211
  %213 = vmatmul.bf16.gmra.mxu0 %v117
  %v214 = vpop.f32.mrf.mxu0
  %v215 = vadd.f32 0.0, %v214
  %v216 = vpop.f32.mrf.mxu0
  %v217 = vadd.f32 0.0, %v216
  %218 = vmatmul.bf16.gmra.mxu0 %v118
  %v219 = vpop.f32.mrf.mxu0
  %v220 = vadd.f32 0.0, %v219
  %v221 = vpop.f32.mrf.mxu0
  %v222 = vadd.f32 0.0, %v221
  %223 = vdwg.mxu0
  %v224 = vadd.f32 %v31, %v185
  %v225 = vadd.f32 %v32, %v187
  %v226 = vadd.f32 %v33, %v190
  %v227 = vadd.f32 %v34, %v192
  %v228 = vadd.f32 %v35, %v195
  %v229 = vadd.f32 %v36, %v197
  %v230 = vadd.f32 %v37, %v200
  %v231 = vadd.f32 %v38, %v202
  %v232 = vadd.f32 %v39, %v205
  %v233 = vadd.f32 %v40, %v207
  %v234 = vadd.f32 %v41, %v210
  %v235 = vadd.f32 %v42, %v212
  %v236 = vadd.f32 %v43, %v215
  %v237 = vadd.f32 %v44, %v217
  %v238 = vadd.f32 %v45, %v220
  %v239 = vadd.f32 %v46, %v222
  %240 = vst [vmem:[#allocation2] sm:$0xff] %v224
  %241 = vst [vmem:[#allocation2 + $0x8] sm:$0xff] %v225
  %242 = vst [vmem:[#allocation2 + $0x10] sm:$0xff] %v226
  %243 = vst [vmem:[#allocation2 + $0x18] sm:$0xff] %v227
  %244 = vst [vmem:[#allocation2 + $0x20] sm:$0xff] %v228
  %245 = vst [vmem:[#allocation2 + $0x28] sm:$0xff] %v229
  %246 = vst [vmem:[#allocation2 + $0x30] sm:$0xff] %v230
  %247 = vst [vmem:[#allocation2 + $0x38] sm:$0xff] %v231
  %248 = vst [vmem:[#allocation2 + $0x40] sm:$0xff] %v232
  %249 = vst [vmem:[#allocation2 + $0x48] sm:$0xff] %v233
  %250 = vst [vmem:[#allocation2 + $0x50] sm:$0xff] %v234
  %251 = vst [vmem:[#allocation2 + $0x58] sm:$0xff] %v235
  %252 = vst [vmem:[#allocation2 + $0x60] sm:$0xff] %v236
  %253 = vst [vmem:[#allocation2 + $0x68] sm:$0xff] %v237
  %254 = vst [vmem:[#allocation2 + $0x70] sm:$0xff] %v238
  %255 = vst [vmem:[#allocation2 + $0x78] sm:$0xff] %v239
  // Predicated region
  $region14: #{forward.4} parent=0 // pred_check
    %p256 = pneg %p11
  $region15: #{forward.4} parent=0 // pred_check_branch
    %258 = sbr.rel (%p256) target = $region17
  $region16: #{forward.4} parent=0 // pred_region
    %v259 = vld [vmem:[#allocation2] sm:$0xff]
    %v260 = vld [vmem:[#allocation2 + $0x8] sm:$0xff]
    %v261 = vld [vmem:[#allocation2 + $0x10] sm:$0xff]
    %v262 = vld [vmem:[#allocation2 + $0x18] sm:$0xff]
    %v263 = vld [vmem:[#allocation2 + $0x20] sm:$0xff]
    %v264 = vld [vmem:[#allocation2 + $0x28] sm:$0xff]
    %v265 = vld [vmem:[#allocation2 + $0x30] sm:$0xff]
    %v266 = vld [vmem:[#allocation2 + $0x38] sm:$0xff]
    %v267 = vld [vmem:[#allocation2 + $0x40] sm:$0xff]
    %v268 = vld [vmem:[#allocation2 + $0x48] sm:$0xff]
    %v269 = vld [vmem:[#allocation2 + $0x50] sm:$0xff]
    %v270 = vld [vmem:[#allocation2 + $0x58] sm:$0xff]
    %v271 = vld [vmem:[#allocation2 + $0x60] sm:$0xff]
    %v272 = vld [vmem:[#allocation2 + $0x68] sm:$0xff]
    %v273 = vld [vmem:[#allocation2 + $0x70] sm:$0xff]
    %v274 = vld [vmem:[#allocation2 + $0x78] sm:$0xff]
    %v275 = vpack.c.bf16 %v259, %v259
    %v276 = vpack.c.bf16 %v260, %v260
    %v277 = vpack.c.bf16 %v261, %v261
    %v278 = vpack.c.bf16 %v262, %v262
    %v279 = vpack.c.bf16 %v263, %v263
    %v280 = vpack.c.bf16 %v264, %v264
    %v281 = vpack.c.bf16 %v265, %v265
    %v282 = vpack.c.bf16 %v266, %v266
    %v283 = vpack.c.bf16 %v267, %v267
    %v284 = vpack.c.bf16 %v268, %v268
    %v285 = vpack.c.bf16 %v269, %v269
    %v286 = vpack.c.bf16 %v270, %v270
    %v287 = vpack.c.bf16 %v271, %v271
    %v288 = vpack.c.bf16 %v272, %v272
    %v289 = vpack.c.bf16 %v273, %v273
    %v290 = vpack.c.bf16 %v274, %v274
    %291 = vst [vmem:[%s2] sm:$0xf] %v275
    %292 = vst [vmem:[%s2 + $0x4] sm:$0xf] %v276
    %293 = vst [vmem:[%s2 + $0x8] sm:$0xf] %v277
    %294 = vst [vmem:[%s2 + $0xc] sm:$0xf] %v278
    %295 = vst [vmem:[%s2 + $0x10] sm:$0xf] %v279
    %296 = vst [vmem:[%s2 + $0x14] sm:$0xf] %v280
    %297 = vst [vmem:[%s2 + $0x18] sm:$0xf] %v281
    %298 = vst [vmem:[%s2 + $0x1c] sm:$0xf] %v282
    %299 = vst [vmem:[%s2 + $0x20] sm:$0xf] %v283
    %300 = vst [vmem:[%s2 + $0x24] sm:$0xf] %v284
    %301 = vst [vmem:[%s2 + $0x28] sm:$0xf] %v285
    %302 = vst [vmem:[%s2 + $0x2c] sm:$0xf] %v286
    %303 = vst [vmem:[%s2 + $0x30] sm:$0xf] %v287
    %304 = vst [vmem:[%s2 + $0x34] sm:$0xf] %v288
    %305 = vst [vmem:[%s2 + $0x38] sm:$0xf] %v289
    %306 = vst [vmem:[%s2 + $0x3c] sm:$0xf] %v290
  $region17: #{forward.4} parent=0 // pred_fallthru
    _
  // Predicated region
  $region18: #{forward.4} parent=0 // pred_check
    _
  $region19: #{forward.4} parent=0 // pred_check_branch
    %308 = sbr.rel (0) target = $region21
  $region20: #{forward.4} parent=0 // pred_region
    _
  $region21: #{forward.4} parent=0 // pred_fallthru
    _
  // Predicated region
  $region22: #{forward.4} parent=0 // pred_check
    _
  $region23: #{forward.4} parent=0 // pred_check_branch
    %310 = sbr.rel (0) target = $region25
  $region24: #{forward.4} parent=0 // pred_region
    _
  $region25: #{forward.4} parent=0 // pred_fallthru
    _

// kernel: forward.7
$region0: #{forward.7}
  #allocation0 [shape = 'u32[]', space=smem, size = 0x4, offset = 0x4, fixed_abs, tag = 'smem constant byte address 0x4 - core index']
  #allocation1 [shape = 'u32[72,128]{1,0:T(1,128)}', space=vmem, size = 0x9000, scoped, tag = 'internal scratch']
  #allocation2 [shape = 'f32[128,128]{1,0:T(8,128)}', space=vmem, size = 0x10000, scoped, tag = 'scratch operand']
  %s0 = inlined_call_operand.vmem [shape: bf16[128,640], index: 0, kind: input, shape index: {}]
  %s1 = inlined_call_operand.vmem [shape: bf16[640,128], index: 1, kind: input, shape index: {}]
  %s2 = inlined_call_operand.vmem [shape: f32[1,128], index: 2, kind: input, shape index: {}]
  %s3 = inlined_call_operand.hbm [shape: f32[128,128], index: 3, kind: output, shape index: {}]
  %s4 = sld [smem:[#allocation0]]
  $region30: #{forward.7} parent=0
    _
  %s6 = ssub.s32 1, %s4
  %s7 = scalar_select 0, %s6, %s4
  $region1: #{forward.7} parent=0
    #allocation3 [shape = 'u8[65536]{0}', space=vmem, size = 0x10000, scoped, tag = 'output window, operand 0, single buffered']
    #allocation4 [shape = 's32[1]{0}', space=sflag, size = 0x4, scoped, tag = 'scoped memory for forward.7']
    %8 = vsyncpa [#allocation4], 0
    // Predicated region
    $region2: #{forward.7} parent=1 // pred_check
      _
    $region3: #{forward.7} parent=1 // pred_check_branch
      %10 = sbr.rel (0) target = $region5
    $region4: #{forward.7} parent=1 // pred_region
      _
    $region5: #{forward.7} parent=1 // pred_fallthru
      _
    // Predicated region
    $region6: #{forward.7} parent=1 // pred_check
      _
    $region7: #{forward.7} parent=1 // pred_check_branch
      %12 = sbr.rel (0) target = $region9
    $region8: #{forward.7} parent=1 // pred_region
      _
    $region9: #{forward.7} parent=1 // pred_fallthru
      _
    // Predicated region
    $region10: #{forward.7} parent=1 // pred_check
      _
    $region11: #{forward.7} parent=1 // pred_check_branch
      %14 = sbr.rel (0) target = $region13
    $region12: #{forward.7} parent=1 // pred_region
      _
    $region13: #{forward.7} parent=1 // pred_fallthru
      _
    %p15 = scmp.eq.s32.totalorder 0, 0
    // Predicated region
    $region14: #{forward.7} parent=1 // pred_check
      %p16 = pneg %p15
    $region15: #{forward.7} parent=1 // pred_check_branch
      %18 = sbr.rel (%p16) target = $region17
    $region16: #{forward.7} parent=1 // pred_region
      %19 = vst [vmem:[#allocation2] sm:$0xff] 0.0
      %20 = vst [vmem:[#allocation2 + $0x8] sm:$0xff] 0.0
      %21 = vst [vmem:[#allocation2 + $0x10] sm:$0xff] 0.0
      %22 = vst [vmem:[#allocation2 + $0x18] sm:$0xff] 0.0
      %23 = vst [vmem:[#allocation2 + $0x20] sm:$0xff] 0.0
      %24 = vst [vmem:[#allocation2 + $0x28] sm:$0xff] 0.0
      %25 = vst [vmem:[#allocation2 + $0x30] sm:$0xff] 0.0
      %26 = vst [vmem:[#allocation2 + $0x38] sm:$0xff] 0.0
      %27 = vst [vmem:[#allocation2 + $0x40] sm:$0xff] 0.0
      %28 = vst [vmem:[#allocation2 + $0x48] sm:$0xff] 0.0
      %29 = vst [vmem:[#allocation2 + $0x50] sm:$0xff] 0.0
      %30 = vst [vmem:[#allocation2 + $0x58] sm:$0xff] 0.0
      %31 = vst [vmem:[#allocation2 + $0x60] sm:$0xff] 0.0
      %32 = vst [vmem:[#allocation2 + $0x68] sm:$0xff] 0.0
      %33 = vst [vmem:[#allocation2 + $0x70] sm:$0xff] 0.0
      %34 = vst [vmem:[#allocation2 + $0x78] sm:$0xff] 0.0
    $region17: #{forward.7} parent=1 // pred_fallthru
      _
    %v35 = vld [vmem:[#allocation2] sm:$0xff]
    %v36 = vld [vmem:[#allocation2 + $0x8] sm:$0xff]
    %v37 = vld [vmem:[#allocation2 + $0x10] sm:$0xff]
    %v38 = vld [vmem:[#allocation2 + $0x18] sm:$0xff]
    %v39 = vld [vmem:[#allocation2 + $0x20] sm:$0xff]
    %v40 = vld [vmem:[#allocation2 + $0x28] sm:$0xff]
    %v41 = vld [vmem:[#allocation2 + $0x30] sm:$0xff]
    %v42 = vld [vmem:[#allocation2 + $0x38] sm:$0xff]
    %v43 = vld [vmem:[#allocation2 + $0x40] sm:$0xff]
    %v44 = vld [vmem:[#allocation2 + $0x48] sm:$0xff]
    %v45 = vld [vmem:[#allocation2 + $0x50] sm:$0xff]
    %v46 = vld [vmem:[#allocation2 + $0x58] sm:$0xff]
    %v47 = vld [vmem:[#allocation2 + $0x60] sm:$0xff]
    %v48 = vld [vmem:[#allocation2 + $0x68] sm:$0xff]
    %v49 = vld [vmem:[#allocation2 + $0x70] sm:$0xff]
    %v50 = vld [vmem:[#allocation2 + $0x78] sm:$0xff]
    %v51 = vld [vmem:[%s0] sm:$0xff]
    %v52 = vld [vmem:[%s0 + $0x8] sm:$0xff]
    %v53 = vld [vmem:[%s0 + $0x10] sm:$0xf]
    %v54 = vld [vmem:[%s0 + $0x14] sm:$0xff]
    %v55 = vld [vmem:[%s0 + $0x1c] sm:$0xff]
    %v56 = vld [vmem:[%s0 + $0x24] sm:$0xf]
    %v57 = vld [vmem:[%s0 + $0x28] sm:$0xff]
    %v58 = vld [vmem:[%s0 + $0x30] sm:$0xff]
    %v59 = vld [vmem:[%s0 + $0x38] sm:$0xf]
    %v60 = vld [vmem:[%s0 + $0x3c] sm:$0xff]
    %v61 = vld [vmem:[%s0 + $0x44] sm:$0xff]
    %v62 = vld [vmem:[%s0 + $0x4c] sm:$0xf]
    %v63 = vld [vmem:[%s0 + $0x50] sm:$0xff]
    %v64 = vld [vmem:[%s0 + $0x58] sm:$0xff]
    %v65 = vld [vmem:[%s0 + $0x60] sm:$0xf]
    %v66 = vld [vmem:[%s0 + $0x64] sm:$0xff]
    %v67 = vld [vmem:[%s0 + $0x6c] sm:$0xff]
    %v68 = vld [vmem:[%s0 + $0x74] sm:$0xf]
    %v69 = vld [vmem:[%s0 + $0x78] sm:$0xff]
    %v70 = vld [vmem:[%s0 + $0x80] sm:$0xff]
    %v71 = vld [vmem:[%s0 + $0x88] sm:$0xf]
    %v72 = vld [vmem:[%s0 + $0x8c] sm:$0xff]
    %v73 = vld [vmem:[%s0 + $0x94] sm:$0xff]
    %v74 = vld [vmem:[%s0 + $0x9c] sm:$0xf]
    %v75 = vld [vmem:[%s0 + $0xa0] sm:$0xff]
    %v76 = vld [vmem:[%s0 + $0xa8] sm:$0xff]
    %v77 = vld [vmem:[%s0 + $0xb0] sm:$0xf]
    %v78 = vld [vmem:[%s0 + $0xb4] sm:$0xff]
    %v79 = vld [vmem:[%s0 + $0xbc] sm:$0xff]
    %v80 = vld [vmem:[%s0 + $0xc4] sm:$0xf]
    %v81 = vld [vmem:[%s0 + $0xc8] sm:$0xff]
    %v82 = vld [vmem:[%s0 + $0xd0] sm:$0xff]
    %v83 = vld [vmem:[%s0 + $0xd8] sm:$0xf]
    %v84 = vld [vmem:[%s0 + $0xdc] sm:$0xff]
    %v85 = vld [vmem:[%s0 + $0xe4] sm:$0xff]
    %v86 = vld [vmem:[%s0 + $0xec] sm:$0xf]
    %v87 = vld [vmem:[%s0 + $0xf0] sm:$0xff]
    %v88 = vld [vmem:[%s0 + $0xf8] sm:$0xff]
    %v89 = vld [vmem:[%s0 + $0x100] sm:$0xf]
    %v90 = vld [vmem:[%s0 + $0x104] sm:$0xff]
    %v91 = vld [vmem:[%s0 + $0x10c] sm:$0xff]
    %v92 = vld [vmem:[%s0 + $0x114] sm:$0xf]
    %v93 = vld [vmem:[%s0 + $0x118] sm:$0xff]
    %v94 = vld [vmem:[%s0 + $0x120] sm:$0xff]
    %v95 = vld [vmem:[%s0 + $0x128] sm:$0xf]
    %v96 = vld [vmem:[%s0 + $0x12c] sm:$0xff]
    %v97 = vld [vmem:[%s0 + $0x134] sm:$0xff]
    %v98 = vld [vmem:[%s0 + $0x13c] sm:$0xf]
    %v99 = vld [vmem:[%s1] sm:$0xf]
    %v100 = vld [vmem:[%s1 + $0x4] sm:$0xf]
    %v101 = vld [vmem:[%s1 + $0x8] sm:$0xf]
    %v102 = vld [vmem:[%s1 + $0xc] sm:$0xf]
    %v103 = vld [vmem:[%s1 + $0x10] sm:$0xf]
    %v104 = vld [vmem:[%s1 + $0x14] sm:$0xf]
    %v105 = vld [vmem:[%s1 + $0x18] sm:$0xf]
    %v106 = vld [vmem:[%s1 + $0x1c] sm:$0xf]
    %v107 = vld [vmem:[%s1 + $0x20] sm:$0xf]
    %v108 = vld [vmem:[%s1 + $0x24] sm:$0xf]
    %v109 = vld [vmem:[%s1 + $0x28] sm:$0xf]
    %v110 = vld [vmem:[%s1 + $0x2c] sm:$0xf]
    %v111 = vld [vmem:[%s1 + $0x30] sm:$0xf]
    %v112 = vld [vmem:[%s1 + $0x34] sm:$0xf]
    %v113 = vld [vmem:[%s1 + $0x38] sm:$0xf]
    %v114 = vld [vmem:[%s1 + $0x3c] sm:$0xf]
    %v115 = vld [vmem:[%s1 + $0x40] sm:$0xf]
    %v116 = vld [vmem:[%s1 + $0x44] sm:$0xf]
    %v117 = vld [vmem:[%s1 + $0x48] sm:$0xf]
    %v118 = vld [vmem:[%s1 + $0x4c] sm:$0xf]
    %v119 = vld [vmem:[%s1 + $0x50] sm:$0xf]
    %v120 = vld [vmem:[%s1 + $0x54] sm:$0xf]
    %v121 = vld [vmem:[%s1 + $0x58] sm:$0xf]
    %v122 = vld [vmem:[%s1 + $0x5c] sm:$0xf]
    %v123 = vld [vmem:[%s1 + $0x60] sm:$0xf]
    %v124 = vld [vmem:[%s1 + $0x64] sm:$0xf]
    %v125 = vld [vmem:[%s1 + $0x68] sm:$0xf]
    %v126 = vld [vmem:[%s1 + $0x6c] sm:$0xf]
    %v127 = vld [vmem:[%s1 + $0x70] sm:$0xf]
    %v128 = vld [vmem:[%s1 + $0x74] sm:$0xf]
    %v129 = vld [vmem:[%s1 + $0x78] sm:$0xf]
    %v130 = vld [vmem:[%s1 + $0x7c] sm:$0xf]
    %v131 = vld [vmem:[%s1 + $0x80] sm:$0xf]
    %v132 = vld [vmem:[%s1 + $0x84] sm:$0xf]
    %v133 = vld [vmem:[%s1 + $0x88] sm:$0xf]
    %v134 = vld [vmem:[%s1 + $0x8c] sm:$0xf]
    %v135 = vld [vmem:[%s1 + $0x90] sm:$0xf]
    %v136 = vld [vmem:[%s1 + $0x94] sm:$0xf]
    %v137 = vld [vmem:[%s1 + $0x98] sm:$0xf]
    %v138 = vld [vmem:[%s1 + $0x9c] sm:$0xf]
    %v139 = vld [vmem:[%s1 + $0xa0] sm:$0xf]
    %v140 = vld [vmem:[%s1 + $0xa4] sm:$0xf]
    %v141 = vld [vmem:[%s1 + $0xa8] sm:$0xf]
    %v142 = vld [vmem:[%s1 + $0xac] sm:$0xf]
    %v143 = vld [vmem:[%s1 + $0xb0] sm:$0xf]
    %v144 = vld [vmem:[%s1 + $0xb4] sm:$0xf]
    %v145 = vld [vmem:[%s1 + $0xb8] sm:$0xf]
    %v146 = vld [vmem:[%s1 + $0xbc] sm:$0xf]
    %v147 = vld [vmem:[%s1 + $0xc0] sm:$0xf]
    %v148 = vld [vmem:[%s1 + $0xc4] sm:$0xf]
    %v149 = vld [vmem:[%s1 + $0xc8] sm:$0xf]
    %v150 = vld [vmem:[%s1 + $0xcc] sm:$0xf]
    %v151 = vld [vmem:[%s1 + $0xd0] sm:$0xf]
    %v152 = vld [vmem:[%s1 + $0xd4] sm:$0xf]
    %v153 = vld [vmem:[%s1 + $0xd8] sm:$0xf]
    %v154 = vld [vmem:[%s1 + $0xdc] sm:$0xf]
    %v155 = vld [vmem:[%s1 + $0xe0] sm:$0xf]
    %v156 = vld [vmem:[%s1 + $0xe4] sm:$0xf]
    %v157 = vld [vmem:[%s1 + $0xe8] sm:$0xf]
    %v158 = vld [vmem:[%s1 + $0xec] sm:$0xf]
    %v159 = vld [vmem:[%s1 + $0xf0] sm:$0xf]
    %v160 = vld [vmem:[%s1 + $0xf4] sm:$0xf]
    %v161 = vld [vmem:[%s1 + $0xf8] sm:$0xf]
    %v162 = vld [vmem:[%s1 + $0xfc] sm:$0xf]
    %v163 = vld [vmem:[%s1 + $0x100] sm:$0xf]
    %v164 = vld [vmem:[%s1 + $0x104] sm:$0xf]
    %v165 = vld [vmem:[%s1 + $0x108] sm:$0xf]
    %v166 = vld [vmem:[%s1 + $0x10c] sm:$0xf]
    %v167 = vld [vmem:[%s1 + $0x110] sm:$0xf]
    %v168 = vld [vmem:[%s1 + $0x114] sm:$0xf]
    %v169 = vld [vmem:[%s1 + $0x118] sm:$0xf]
    %v170 = vld [vmem:[%s1 + $0x11c] sm:$0xf]
    %v171 = vld [vmem:[%s1 + $0x120] sm:$0xf]
    %v172 = vld [vmem:[%s1 + $0x124] sm:$0xf]
    %v173 = vld [vmem:[%s1 + $0x128] sm:$0xf]
    %v174 = vld [vmem:[%s1 + $0x12c] sm:$0xf]
    %v175 = vld [vmem:[%s1 + $0x130] sm:$0xf]
    %v176 = vld [vmem:[%s1 + $0x134] sm:$0xf]
    %v177 = vld [vmem:[%s1 + $0x138] sm:$0xf]
    %v178 = vld [vmem:[%s1 + $0x13c] sm:$0xf]
    %v227 = vunpack.c.l.b16 %v51
    %v228 = vunpack.c.h.b16 %v51
    %v229 = vunpack.c.l.b16 %v52
    %v230 = vunpack.c.h.b16 %v52
    %v231 = vunpack.c.l.b16 %v53
    %v232 = vunpack.c.l.b16 %v54
    %v233 = vunpack.c.h.b16 %v54
    %v234 = vunpack.c.l.b16 %v55
    %v235 = vunpack.c.h.b16 %v55
    %v236 = vunpack.c.l.b16 %v56
    %v237 = vunpack.c.l.b16 %v57
    %v238 = vunpack.c.h.b16 %v57
    %v239 = vunpack.c.l.b16 %v58
    %v240 = vunpack.c.h.b16 %v58
    %v241 = vunpack.c.l.b16 %v59
    %v242 = vunpack.c.l.b16 %v60
    %v243 = vunpack.c.h.b16 %v60
    %v244 = vunpack.c.l.b16 %v61
    %v245 = vunpack.c.h.b16 %v61
    %v246 = vunpack.c.l.b16 %v62
    %v247 = vunpack.c.l.b16 %v63
    %v248 = vunpack.c.h.b16 %v63
    %v249 = vunpack.c.l.b16 %v64
    %v250 = vunpack.c.h.b16 %v64
    %v251 = vunpack.c.l.b16 %v65
    %v252 = vunpack.c.l.b16 %v66
    %v253 = vunpack.c.h.b16 %v66
    %v254 = vunpack.c.l.b16 %v67
    %v255 = vunpack.c.h.b16 %v67
    %v256 = vunpack.c.l.b16 %v68
    %v257 = vunpack.c.l.b16 %v69
    %v258 = vunpack.c.h.b16 %v69
    %v259 = vunpack.c.l.b16 %v70
    %v260 = vunpack.c.h.b16 %v70
    %v261 = vunpack.c.l.b16 %v71
    %v262 = vunpack.c.l.b16 %v72
    %v263 = vunpack.c.h.b16 %v72
    %v264 = vunpack.c.l.b16 %v73
    %v265 = vunpack.c.h.b16 %v73
    %v266 = vunpack.c.l.b16 %v74
    %v267 = vunpack.c.l.b16 %v75
    %v268 = vunpack.c.h.b16 %v75
    %v269 = vunpack.c.l.b16 %v76
    %v270 = vunpack.c.h.b16 %v76
    %v271 = vunpack.c.l.b16 %v77
    %v272 = vunpack.c.l.b16 %v78
    %v273 = vunpack.c.h.b16 %v78
    %v274 = vunpack.c.l.b16 %v79
    %v275 = vunpack.c.h.b16 %v79
    %v276 = vunpack.c.l.b16 %v80
    %v277 = vunpack.c.l.b16 %v81
    %v278 = vunpack.c.h.b16 %v81
    %v279 = vunpack.c.l.b16 %v82
    %v280 = vunpack.c.h.b16 %v82
    %v281 = vunpack.c.l.b16 %v83
    %v282 = vunpack.c.l.b16 %v84
    %v283 = vunpack.c.h.b16 %v84
    %v284 = vunpack.c.l.b16 %v85
    %v285 = vunpack.c.h.b16 %v85
    %v286 = vunpack.c.l.b16 %v86
    %v287 = vunpack.c.l.b16 %v87
    %v288 = vunpack.c.h.b16 %v87
    %v289 = vunpack.c.l.b16 %v88
    %v290 = vunpack.c.h.b16 %v88
    %v291 = vunpack.c.l.b16 %v89
    %v292 = vunpack.c.l.b16 %v90
    %v293 = vunpack.c.h.b16 %v90
    %v294 = vunpack.c.l.b16 %v91
    %v295 = vunpack.c.h.b16 %v91
    %v296 = vunpack.c.l.b16 %v92
    %v297 = vunpack.c.l.b16 %v93
    %v298 = vunpack.c.h.b16 %v93
    %v299 = vunpack.c.l.b16 %v94
    %v300 = vunpack.c.h.b16 %v94
    %v301 = vunpack.c.l.b16 %v95
    %v302 = vunpack.c.l.b16 %v96
    %v303 = vunpack.c.h.b16 %v96
    %v304 = vunpack.c.l.b16 %v97
    %v305 = vunpack.c.h.b16 %v97
    %v306 = vunpack.c.l.b16 %v98
    %v307 = vpack.c.b16 %v232, %v227
    %v308 = vpack.c.b16 %v233, %v228
    %v309 = vpack.c.b16 %v234, %v229
    %v310 = vpack.c.b16 %v235, %v230
    %v311 = vpack.c.b16 %v236, %v231
    %v312 = vpack.c.b16 %v242, %v237
    %v313 = vpack.c.b16 %v243, %v238
    %v314 = vpack.c.b16 %v244, %v239
    %v315 = vpack.c.b16 %v245, %v240
    %v316 = vpack.c.b16 %v246, %v241
    %v317 = vpack.c.b16 %v252, %v247
    %v318 = vpack.c.b16 %v253, %v248
    %v319 = vpack.c.b16 %v254, %v249
    %v320 = vpack.c.b16 %v255, %v250
    %v321 = vpack.c.b16 %v256, %v251
    %v322 = vpack.c.b16 %v262, %v257
    %v323 = vpack.c.b16 %v263, %v258
    %v324 = vpack.c.b16 %v264, %v259
    %v325 = vpack.c.b16 %v265, %v260
    %v326 = vpack.c.b16 %v266, %v261
    %v327 = vpack.c.b16 %v272, %v267
    %v328 = vpack.c.b16 %v273, %v268
    %v329 = vpack.c.b16 %v274, %v269
    %v330 = vpack.c.b16 %v275, %v270
    %v331 = vpack.c.b16 %v276, %v271
    %v332 = vpack.c.b16 %v282, %v277
    %v333 = vpack.c.b16 %v283, %v278
    %v334 = vpack.c.b16 %v284, %v279
    %v335 = vpack.c.b16 %v285, %v280
    %v336 = vpack.c.b16 %v286, %v281
    %v337 = vpack.c.b16 %v292, %v287
    %v338 = vpack.c.b16 %v293, %v288
    %v339 = vpack.c.b16 %v294, %v289
    %v340 = vpack.c.b16 %v295, %v290
    %v341 = vpack.c.b16 %v296, %v291
    %v342 = vpack.c.b16 %v302, %v297
    %v343 = vpack.c.b16 %v303, %v298
    %v344 = vpack.c.b16 %v304, %v299
    %v345 = vpack.c.b16 %v305, %v300
    %v346 = vpack.c.b16 %v306, %v301
    %v467 = vunpack.c.l.b16 %v99
    %v468 = vunpack.c.l.b16 %v100
    %v469 = vunpack.c.l.b16 %v101
    %v470 = vunpack.c.l.b16 %v102
    %v471 = vunpack.c.l.b16 %v103
    %v472 = vunpack.c.l.b16 %v104
    %v473 = vunpack.c.l.b16 %v105
    %v474 = vunpack.c.l.b16 %v106
    %v475 = vunpack.c.l.b16 %v107
    %v476 = vunpack.c.l.b16 %v108
    %v477 = vunpack.c.l.b16 %v109
    %v478 = vunpack.c.l.b16 %v110
    %v479 = vunpack.c.l.b16 %v111
    %v480 = vunpack.c.l.b16 %v112
    %v481 = vunpack.c.l.b16 %v113
    %v482 = vunpack.c.l.b16 %v114
    %v483 = vunpack.c.l.b16 %v115
    %v484 = vunpack.c.l.b16 %v116
    %v485 = vunpack.c.l.b16 %v117
    %v486 = vunpack.c.l.b16 %v118
    %v487 = vunpack.c.l.b16 %v119
    %v488 = vunpack.c.l.b16 %v120
    %v489 = vunpack.c.l.b16 %v121
    %v490 = vunpack.c.l.b16 %v122
    %v491 = vunpack.c.l.b16 %v123
    %v492 = vunpack.c.l.b16 %v124
    %v493 = vunpack.c.l.b16 %v125
    %v494 = vunpack.c.l.b16 %v126
    %v495 = vunpack.c.l.b16 %v127
    %v496 = vunpack.c.l.b16 %v128
    %v497 = vunpack.c.l.b16 %v129
    %v498 = vunpack.c.l.b16 %v130
    %v499 = vunpack.c.l.b16 %v131
    %v500 = vunpack.c.l.b16 %v132
    %v501 = vunpack.c.l.b16 %v133
    %v502 = vunpack.c.l.b16 %v134
    %v503 = vunpack.c.l.b16 %v135
    %v504 = vunpack.c.l.b16 %v136
    %v505 = vunpack.c.l.b16 %v137
    %v506 = vunpack.c.l.b16 %v138
    %v507 = vunpack.c.l.b16 %v139
    %v508 = vunpack.c.l.b16 %v140
    %v509 = vunpack.c.l.b16 %v141
    %v510 = vunpack.c.l.b16 %v142
    %v511 = vunpack.c.l.b16 %v143
    %v512 = vunpack.c.l.b16 %v144
    %v513 = vunpack.c.l.b16 %v145
    %v514 = vunpack.c.l.b16 %v146
    %v515 = vunpack.c.l.b16 %v147
    %v516 = vunpack.c.l.b16 %v148
    %v517 = vunpack.c.l.b16 %v149
    %v518 = vunpack.c.l.b16 %v150
    %v519 = vunpack.c.l.b16 %v151
    %v520 = vunpack.c.l.b16 %v152
    %v521 = vunpack.c.l.b16 %v153
    %v522 = vunpack.c.l.b16 %v154
    %v523 = vunpack.c.l.b16 %v155
    %v524 = vunpack.c.l.b16 %v156
    %v525 = vunpack.c.l.b16 %v157
    %v526 = vunpack.c.l.b16 %v158
    %v527 = vunpack.c.l.b16 %v159
    %v528 = vunpack.c.l.b16 %v160
    %v529 = vunpack.c.l.b16 %v161
    %v530 = vunpack.c.l.b16 %v162
    %v531 = vunpack.c.l.b16 %v163
    %v532 = vunpack.c.l.b16 %v164
    %v533 = vunpack.c.l.b16 %v165
    %v534 = vunpack.c.l.b16 %v166
    %v535 = vunpack.c.l.b16 %v167
    %v536 = vunpack.c.l.b16 %v168
    %v537 = vunpack.c.l.b16 %v169
    %v538 = vunpack.c.l.b16 %v170
    %v539 = vunpack.c.l.b16 %v171
    %v540 = vunpack.c.l.b16 %v172
    %v541 = vunpack.c.l.b16 %v173
    %v542 = vunpack.c.l.b16 %v174
    %v543 = vunpack.c.l.b16 %v175
    %v544 = vunpack.c.l.b16 %v176
    %v545 = vunpack.c.l.b16 %v177
    %v546 = vunpack.c.l.b16 %v178
    %v547 = vpack.c.b16 %v468, %v467
    %v548 = vpack.c.b16 %v470, %v469
    %v549 = vpack.c.b16 %v472, %v471
    %v550 = vpack.c.b16 %v474, %v473
    %v551 = vpack.c.b16 %v476, %v475
    %v552 = vpack.c.b16 %v478, %v477
    %v553 = vpack.c.b16 %v480, %v479
    %v554 = vpack.c.b16 %v482, %v481
    %v555 = vpack.c.b16 %v484, %v483
    %v556 = vpack.c.b16 %v486, %v485
    %v557 = vpack.c.b16 %v488, %v487
    %v558 = vpack.c.b16 %v490, %v489
    %v559 = vpack.c.b16 %v492, %v491
    %v560 = vpack.c.b16 %v494, %v493
    %v561 = vpack.c.b16 %v496, %v495
    %v562 = vpack.c.b16 %v498, %v497
    %v563 = vpack.c.b16 %v500, %v499
    %v564 = vpack.c.b16 %v502, %v501
    %v565 = vpack.c.b16 %v504, %v503
    %v566 = vpack.c.b16 %v506, %v505
    %v567 = vpack.c.b16 %v508, %v507
    %v568 = vpack.c.b16 %v510, %v509
    %v569 = vpack.c.b16 %v512, %v511
    %v570 = vpack.c.b16 %v514, %v513
    %v571 = vpack.c.b16 %v516, %v515
    %v572 = vpack.c.b16 %v518, %v517
    %v573 = vpack.c.b16 %v520, %v519
    %v574 = vpack.c.b16 %v522, %v521
    %v575 = vpack.c.b16 %v524, %v523
    %v576 = vpack.c.b16 %v526, %v525
    %v577 = vpack.c.b16 %v528, %v527
    %v578 = vpack.c.b16 %v530, %v529
    %v579 = vpack.c.b16 %v532, %v531
    %v580 = vpack.c.b16 %v534, %v533
    %v581 = vpack.c.b16 %v536, %v535
    %v582 = vpack.c.b16 %v538, %v537
    %v583 = vpack.c.b16 %v540, %v539
    %v584 = vpack.c.b16 %v542, %v541
    %v585 = vpack.c.b16 %v544, %v543
    %v586 = vpack.c.b16 %v546, %v545
    %627 = vmatpush.bf16.msra.mxu0 %v554
    %628 = vmatpush.bf16.msra.mxu0 %v553
    %629 = vmatpush.bf16.msra.mxu0 %v552
    %630 = vmatpush.bf16.msra.mxu0 %v551
    %631 = vmatpush.bf16.msra.mxu0 %v550
    %632 = vmatpush.bf16.msra.mxu0 %v549
    %633 = vmatpush.bf16.msra.mxu0 %v548
    %634 = vmatpush.bf16.msra.mxu0 %v547
    %635 = vmatmul.bf16.gmra.mxu0 %v307
    %v636 = vpop.f32.mrf.mxu0
    %v637 = vadd.f32 0.0, %v636
    %v638 = vpop.f32.mrf.mxu0
    %v639 = vadd.f32 0.0, %v638
    %640 = vmatmul.bf16.gmra.mxu0 %v312
    %v641 = vpop.f32.mrf.mxu0
    %v642 = vadd.f32 0.0, %v641
    %v643 = vpop.f32.mrf.mxu0
    %v644 = vadd.f32 0.0, %v643
    %645 = vmatmul.bf16.gmra.mxu0 %v317
    %v646 = vpop.f32.mrf.mxu0
    %v647 = vadd.f32 0.0, %v646
    %v648 = vpop.f32.mrf.mxu0
    %v649 = vadd.f32 0.0, %v648
    %650 = vmatmul.bf16.gmra.mxu0 %v322
    %v651 = vpop.f32.mrf.mxu0
    %v652 = vadd.f32 0.0, %v651
    %v653 = vpop.f32.mrf.mxu0
    %v654 = vadd.f32 0.0, %v653
    %655 = vmatmul.bf16.gmra.mxu0 %v327
    %v656 = vpop.f32.mrf.mxu0
    %v657 = vadd.f32 0.0, %v656
    %v658 = vpop.f32.mrf.mxu0
    %v659 = vadd.f32 0.0, %v658
    %660 = vmatmul.bf16.gmra.mxu0 %v332
    %v661 = vpop.f32.mrf.mxu0
    %v662 = vadd.f32 0.0, %v661
    %v663 = vpop.f32.mrf.mxu0
    %v664 = vadd.f32 0.0, %v663
    %665 = vmatmul.bf16.gmra.mxu0 %v337
    %v666 = vpop.f32.mrf.mxu0
    %v667 = vadd.f32 0.0, %v666
    %v668 = vpop.f32.mrf.mxu0
    %v669 = vadd.f32 0.0, %v668
    %670 = vmatmul.bf16.gmra.mxu0 %v342
    %v671 = vpop.f32.mrf.mxu0
    %v672 = vadd.f32 0.0, %v671
    %v673 = vpop.f32.mrf.mxu0
    %v674 = vadd.f32 0.0, %v673
    %675 = vdwg.mxu0
    %676 = vmatpush.bf16.msra.mxu0 %v562
    %677 = vmatpush.bf16.msra.mxu0 %v561
    %678 = vmatpush.bf16.msra.mxu0 %v560
    %679 = vmatpush.bf16.msra.mxu0 %v559
    %680 = vmatpush.bf16.msra.mxu0 %v558
    %681 = vmatpush.bf16.msra.mxu0 %v557
    %682 = vmatpush.bf16.msra.mxu0 %v556
    %683 = vmatpush.bf16.msra.mxu0 %v555
    %684 = vmatmul.bf16.gmra.mxu0 %v308
    %v685 = vpop.f32.mrf.mxu0
    %v686 = vadd.f32 %v637, %v685
    %v687 = vpop.f32.mrf.mxu0
    %v688 = vadd.f32 %v639, %v687
    %689 = vmatmul.bf16.gmra.mxu0 %v313
    %v690 = vpop.f32.mrf.mxu0
    %v691 = vadd.f32 %v642, %v690
    %v692 = vpop.f32.mrf.mxu0
    %v693 = vadd.f32 %v644, %v692
    %694 = vmatmul.bf16.gmra.mxu0 %v318
    %v695 = vpop.f32.mrf.mxu0
    %v696 = vadd.f32 %v647, %v695
    %v697 = vpop.f32.mrf.mxu0
    %v698 = vadd.f32 %v649, %v697
    %699 = vmatmul.bf16.gmra.mxu0 %v323
    %v700 = vpop.f32.mrf.mxu0
    %v701 = vadd.f32 %v652, %v700
    %v702 = vpop.f32.mrf.mxu0
    %v703 = vadd.f32 %v654, %v702
    %704 = vmatmul.bf16.gmra.mxu0 %v328
    %v705 = vpop.f32.mrf.mxu0
    %v706 = vadd.f32 %v657, %v705
    %v707 = vpop.f32.mrf.mxu0
    %v708 = vadd.f32 %v659, %v707
    %709 = vmatmul.bf16.gmra.mxu0 %v333
    %v710 = vpop.f32.mrf.mxu0
    %v711 = vadd.f32 %v662, %v710
    %v712 = vpop.f32.mrf.mxu0
    %v713 = vadd.f32 %v664, %v712
    %714 = vmatmul.bf16.gmra.mxu0 %v338
    %v715 = vpop.f32.mrf.mxu0
    %v716 = vadd.f32 %v667, %v715
    %v717 = vpop.f32.mrf.mxu0
    %v718 = vadd.f32 %v669, %v717
    %719 = vmatmul.bf16.gmra.mxu0 %v343
    %v720 = vpop.f32.mrf.mxu0
    %v721 = vadd.f32 %v672, %v720
    %v722 = vpop.f32.mrf.mxu0
    %v723 = vadd.f32 %v674, %v722
    %724 = vdwg.mxu0
    %725 = vmatpush.bf16.msra.mxu0 %v570
    %726 = vmatpush.bf16.msra.mxu0 %v569
    %727 = vmatpush.bf16.msra.mxu0 %v568
    %728 = vmatpush.bf16.msra.mxu0 %v567
    %729 = vmatpush.bf16.msra.mxu0 %v566
    %730 = vmatpush.bf16.msra.mxu0 %v565
    %731 = vmatpush.bf16.msra.mxu0 %v564
    %732 = vmatpush.bf16.msra.mxu0 %v563
    %733 = vmatmul.bf16.gmra.mxu0 %v309
    %v734 = vpop.f32.mrf.mxu0
    %v735 = vadd.f32 %v686, %v734
    %v736 = vpop.f32.mrf.mxu0
    %v737 = vadd.f32 %v688, %v736
    %738 = vmatmul.bf16.gmra.mxu0 %v314
    %v739 = vpop.f32.mrf.mxu0
    %v740 = vadd.f32 %v691, %v739
    %v741 = vpop.f32.mrf.mxu0
    %v742 = vadd.f32 %v693, %v741
    %743 = vmatmul.bf16.gmra.mxu0 %v319
    %v744 = vpop.f32.mrf.mxu0
    %v745 = vadd.f32 %v696, %v744
    %v746 = vpop.f32.mrf.mxu0
    %v747 = vadd.f32 %v698, %v746
    %748 = vmatmul.bf16.gmra.mxu0 %v324
    %v749 = vpop.f32.mrf.mxu0
    %v750 = vadd.f32 %v701, %v749
    %v751 = vpop.f32.mrf.mxu0
    %v752 = vadd.f32 %v703, %v751
    %753 = vmatmul.bf16.gmra.mxu0 %v329
    %v754 = vpop.f32.mrf.mxu0
    %v755 = vadd.f32 %v706, %v754
    %v756 = vpop.f32.mrf.mxu0
    %v757 = vadd.f32 %v708, %v756
    %758 = vmatmul.bf16.gmra.mxu0 %v334
    %v759 = vpop.f32.mrf.mxu0
    %v760 = vadd.f32 %v711, %v759
    %v761 = vpop.f32.mrf.mxu0
    %v762 = vadd.f32 %v713, %v761
    %763 = vmatmul.bf16.gmra.mxu0 %v339
    %v764 = vpop.f32.mrf.mxu0
    %v765 = vadd.f32 %v716, %v764
    %v766 = vpop.f32.mrf.mxu0
    %v767 = vadd.f32 %v718, %v766
    %768 = vmatmul.bf16.gmra.mxu0 %v344
    %v769 = vpop.f32.mrf.mxu0
    %v770 = vadd.f32 %v721, %v769
    %v771 = vpop.f32.mrf.mxu0
    %v772 = vadd.f32 %v723, %v771
    %773 = vdwg.mxu0
    %774 = vmatpush.bf16.msra.mxu0 %v578
    %775 = vmatpush.bf16.msra.mxu0 %v577
    %776 = vmatpush.bf16.msra.mxu0 %v576
    %777 = vmatpush.bf16.msra.mxu0 %v575
    %778 = vmatpush.bf16.msra.mxu0 %v574
    %779 = vmatpush.bf16.msra.mxu0 %v573
    %780 = vmatpush.bf16.msra.mxu0 %v572
    %781 = vmatpush.bf16.msra.mxu0 %v571
    %782 = vmatmul.bf16.gmra.mxu0 %v310
    %v783 = vpop.f32.mrf.mxu0
    %v784 = vadd.f32 %v735, %v783
    %v785 = vpop.f32.mrf.mxu0
    %v786 = vadd.f32 %v737, %v785
    %787 = vmatmul.bf16.gmra.mxu0 %v315
    %v788 = vpop.f32.mrf.mxu0
    %v789 = vadd.f32 %v740, %v788
    %v790 = vpop.f32.mrf.mxu0
    %v791 = vadd.f32 %v742, %v790
    %792 = vmatmul.bf16.gmra.mxu0 %v320
    %v793 = vpop.f32.mrf.mxu0
    %v794 = vadd.f32 %v745, %v793
    %v795 = vpop.f32.mrf.mxu0
    %v796 = vadd.f32 %v747, %v795
    %797 = vmatmul.bf16.gmra.mxu0 %v325
    %v798 = vpop.f32.mrf.mxu0
    %v799 = vadd.f32 %v750, %v798
    %v800 = vpop.f32.mrf.mxu0
    %v801 = vadd.f32 %v752, %v800
    %802 = vmatmul.bf16.gmra.mxu0 %v330
    %v803 = vpop.f32.mrf.mxu0
    %v804 = vadd.f32 %v755, %v803
    %v805 = vpop.f32.mrf.mxu0
    %v806 = vadd.f32 %v757, %v805
    %807 = vmatmul.bf16.gmra.mxu0 %v335
    %v808 = vpop.f32.mrf.mxu0
    %v809 = vadd.f32 %v760, %v808
    %v810 = vpop.f32.mrf.mxu0
    %v811 = vadd.f32 %v762, %v810
    %812 = vmatmul.bf16.gmra.mxu0 %v340
    %v813 = vpop.f32.mrf.mxu0
    %v814 = vadd.f32 %v765, %v813
    %v815 = vpop.f32.mrf.mxu0
    %v816 = vadd.f32 %v767, %v815
    %817 = vmatmul.bf16.gmra.mxu0 %v345
    %v818 = vpop.f32.mrf.mxu0
    %v819 = vadd.f32 %v770, %v818
    %v820 = vpop.f32.mrf.mxu0
    %v821 = vadd.f32 %v772, %v820
    %822 = vdwg.mxu0
    %823 = vmatpush.bf16.msra.mxu0 %v586
    %824 = vmatpush.bf16.msra.mxu0 %v585
    %825 = vmatpush.bf16.msra.mxu0 %v584
    %826 = vmatpush.bf16.msra.mxu0 %v583
    %827 = vmatpush.bf16.msra.mxu0 %v582
    %828 = vmatpush.bf16.msra.mxu0 %v581
    %829 = vmatpush.bf16.msra.mxu0 %v580
    %830 = vmatpush.bf16.msra.mxu0 %v579
    %831 = vmatmul.bf16.gmra.mxu0 %v311
    %v832 = vpop.f32.mrf.mxu0
    %v833 = vadd.f32 %v784, %v832
    %v834 = vpop.f32.mrf.mxu0
    %v835 = vadd.f32 %v786, %v834
    %836 = vmatmul.bf16.gmra.mxu0 %v316
    %v837 = vpop.f32.mrf.mxu0
    %v838 = vadd.f32 %v789, %v837
    %v839 = vpop.f32.mrf.mxu0
    %v840 = vadd.f32 %v791, %v839
    %841 = vmatmul.bf16.gmra.mxu0 %v321
    %v842 = vpop.f32.mrf.mxu0
    %v843 = vadd.f32 %v794, %v842
    %v844 = vpop.f32.mrf.mxu0
    %v845 = vadd.f32 %v796, %v844
    %846 = vmatmul.bf16.gmra.mxu0 %v326
    %v847 = vpop.f32.mrf.mxu0
    %v848 = vadd.f32 %v799, %v847
    %v849 = vpop.f32.mrf.mxu0
    %v850 = vadd.f32 %v801, %v849
    %851 = vmatmul.bf16.gmra.mxu0 %v331
    %v852 = vpop.f32.mrf.mxu0
    %v853 = vadd.f32 %v804, %v852
    %v854 = vpop.f32.mrf.mxu0
    %v855 = vadd.f32 %v806, %v854
    %856 = vmatmul.bf16.gmra.mxu0 %v336
    %v857 = vpop.f32.mrf.mxu0
    %v858 = vadd.f32 %v809, %v857
    %v859 = vpop.f32.mrf.mxu0
    %v860 = vadd.f32 %v811, %v859
    %861 = vmatmul.bf16.gmra.mxu0 %v341
    %v862 = vpop.f32.mrf.mxu0
    %v863 = vadd.f32 %v814, %v862
    %v864 = vpop.f32.mrf.mxu0
    %v865 = vadd.f32 %v816, %v864
    %866 = vmatmul.bf16.gmra.mxu0 %v346
    %v867 = vpop.f32.mrf.mxu0
    %v868 = vadd.f32 %v819, %v867
    %v869 = vpop.f32.mrf.mxu0
    %v870 = vadd.f32 %v821, %v869
    %871 = vdwg.mxu0
    %v872 = vadd.f32 %v35, %v833
    %v873 = vadd.f32 %v36, %v835
    %v874 = vadd.f32 %v37, %v838
    %v875 = vadd.f32 %v38, %v840
    %v876 = vadd.f32 %v39, %v843
    %v877 = vadd.f32 %v40, %v845
    %v878 = vadd.f32 %v41, %v848
    %v879 = vadd.f32 %v42, %v850
    %v880 = vadd.f32 %v43, %v853
    %v881 = vadd.f32 %v44, %v855
    %v882 = vadd.f32 %v45, %v858
    %v883 = vadd.f32 %v46, %v860
    %v884 = vadd.f32 %v47, %v863
    %v885 = vadd.f32 %v48, %v865
    %v886 = vadd.f32 %v49, %v868
    %v887 = vadd.f32 %v50, %v870
    %888 = vst [vmem:[#allocation2] sm:$0xff] %v872
    %889 = vst [vmem:[#allocation2 + $0x8] sm:$0xff] %v873
    %890 = vst [vmem:[#allocation2 + $0x10] sm:$0xff] %v874
    %891 = vst [vmem:[#allocation2 + $0x18] sm:$0xff] %v875
    %892 = vst [vmem:[#allocation2 + $0x20] sm:$0xff] %v876
    %893 = vst [vmem:[#allocation2 + $0x28] sm:$0xff] %v877
    %894 = vst [vmem:[#allocation2 + $0x30] sm:$0xff] %v878
    %895 = vst [vmem:[#allocation2 + $0x38] sm:$0xff] %v879
    %896 = vst [vmem:[#allocation2 + $0x40] sm:$0xff] %v880
    %897 = vst [vmem:[#allocation2 + $0x48] sm:$0xff] %v881
    %898 = vst [vmem:[#allocation2 + $0x50] sm:$0xff] %v882
    %899 = vst [vmem:[#allocation2 + $0x58] sm:$0xff] %v883
    %900 = vst [vmem:[#allocation2 + $0x60] sm:$0xff] %v884
    %901 = vst [vmem:[#allocation2 + $0x68] sm:$0xff] %v885
    %902 = vst [vmem:[#allocation2 + $0x70] sm:$0xff] %v886
    %903 = vst [vmem:[#allocation2 + $0x78] sm:$0xff] %v887
    // Predicated region
    $region18: #{forward.7} parent=1 // pred_check
      %p904 = pneg %p15
    $region19: #{forward.7} parent=1 // pred_check_branch
      %906 = sbr.rel (%p904) target = $region21
    $region20: #{forward.7} parent=1 // pred_region
      %v907 = vld [vmem:[#allocation2] sm:$0xff]
      %v908 = vld [vmem:[#allocation2 + $0x8] sm:$0xff]
      %v909 = vld [vmem:[#allocation2 + $0x10] sm:$0xff]
      %v910 = vld [vmem:[#allocation2 + $0x18] sm:$0xff]
      %v911 = vld [vmem:[#allocation2 + $0x20] sm:$0xff]
      %v912 = vld [vmem:[#allocation2 + $0x28] sm:$0xff]
      %v913 = vld [vmem:[#allocation2 + $0x30] sm:$0xff]
      %v914 = vld [vmem:[#allocation2 + $0x38] sm:$0xff]
      %v915 = vld [vmem:[#allocation2 + $0x40] sm:$0xff]
      %v916 = vld [vmem:[#allocation2 + $0x48] sm:$0xff]
      %v917 = vld [vmem:[#allocation2 + $0x50] sm:$0xff]
      %v918 = vld [vmem:[#allocation2 + $0x58] sm:$0xff]
      %v919 = vld [vmem:[#allocation2 + $0x60] sm:$0xff]
      %v920 = vld [vmem:[#allocation2 + $0x68] sm:$0xff]
      %v921 = vld [vmem:[#allocation2 + $0x70] sm:$0xff]
      %v922 = vld [vmem:[#allocation2 + $0x78] sm:$0xff]
      %v923 = vld [vmem:[%s2] sm:$0x1]
      %v925 = vperm.slane %v923, 0
      %v927 = vadd.f32 %v907, %v925
      %v928 = vadd.f32 %v908, %v925
      %v929 = vadd.f32 %v909, %v925
      %v930 = vadd.f32 %v910, %v925
      %v931 = vadd.f32 %v911, %v925
      %v932 = vadd.f32 %v912, %v925
      %v933 = vadd.f32 %v913, %v925
      %v934 = vadd.f32 %v914, %v925
      %v935 = vadd.f32 %v915, %v925
      %v936 = vadd.f32 %v916, %v925
      %v937 = vadd.f32 %v917, %v925
      %v938 = vadd.f32 %v918, %v925
      %v939 = vadd.f32 %v919, %v925
      %v940 = vadd.f32 %v920, %v925
      %v941 = vadd.f32 %v921, %v925
      %v942 = vadd.f32 %v922, %v925
      %v943 = vmax.f32 %v927, 0.0
      %v944 = vmax.f32 %v928, 0.0
      %v945 = vmax.f32 %v929, 0.0
      %v946 = vmax.f32 %v930, 0.0
      %v947 = vmax.f32 %v931, 0.0
      %v948 = vmax.f32 %v932, 0.0
      %v949 = vmax.f32 %v933, 0.0
      %v950 = vmax.f32 %v934, 0.0
      %v951 = vmax.f32 %v935, 0.0
      %v952 = vmax.f32 %v936, 0.0
      %v953 = vmax.f32 %v937, 0.0
      %v954 = vmax.f32 %v938, 0.0
      %v955 = vmax.f32 %v939, 0.0
      %v956 = vmax.f32 %v940, 0.0
      %v957 = vmax.f32 %v941, 0.0
      %v958 = vmax.f32 %v942, 0.0
      %959 = vst [vmem:[#allocation3] sm:$0xff] %v943
      %960 = vst [vmem:[#allocation3 + $0x8] sm:$0xff] %v944
      %961 = vst [vmem:[#allocation3 + $0x10] sm:$0xff] %v945
      %962 = vst [vmem:[#allocation3 + $0x18] sm:$0xff] %v946
      %963 = vst [vmem:[#allocation3 + $0x20] sm:$0xff] %v947
      %964 = vst [vmem:[#allocation3 + $0x28] sm:$0xff] %v948
      %965 = vst [vmem:[#allocation3 + $0x30] sm:$0xff] %v949
      %966 = vst [vmem:[#allocation3 + $0x38] sm:$0xff] %v950
      %967 = vst [vmem:[#allocation3 + $0x40] sm:$0xff] %v951
      %968 = vst [vmem:[#allocation3 + $0x48] sm:$0xff] %v952
      %969 = vst [vmem:[#allocation3 + $0x50] sm:$0xff] %v953
      %970 = vst [vmem:[#allocation3 + $0x58] sm:$0xff] %v954
      %971 = vst [vmem:[#allocation3 + $0x60] sm:$0xff] %v955
      %972 = vst [vmem:[#allocation3 + $0x68] sm:$0xff] %v956
      %973 = vst [vmem:[#allocation3 + $0x70] sm:$0xff] %v957
      %974 = vst [vmem:[#allocation3 + $0x78] sm:$0xff] %v958
    $region21: #{forward.7} parent=1 // pred_fallthru
      _
    // Predicated region
    $region22: #{forward.7} parent=1 // pred_check
      _
    $region23: #{forward.7} parent=1 // pred_check_branch
      %976 = sbr.rel (0) target = $region25
    $region24: #{forward.7} parent=1 // pred_region
      %978 = vsyncadd [#allocation4], 0
      %s979 = sshll.u32 [#allocation3], 4
      %s980 = int_to_ptr.vmem [resolvable:$true] %s979
      %s981 = sshll.u32 %s3, 4
      %s982 = int_to_ptr.hbm [resolvable:$true] %s981
      %987 = dma.vmem_to_hbm [thread:$0]  %s980, 2048, %s982, [#allocation4], 128, 128, 8
    $region25: #{forward.7} parent=1 // pred_fallthru
      _
    // Predicated region
    $region26: #{forward.7} parent=1 // pred_check
      _
    $region27: #{forward.7} parent=1 // pred_check_branch
      %989 = sbr.rel (0) target = $region29
    $region28: #{forward.7} parent=1 // pred_region
      %991 = dma.done [#allocation4], 2048
    $region29: #{forward.7} parent=1 // pred_fallthru
      _
    %992 = vsyncpa [#allocation4], 1

</llo_original>
